<compile_context>
chip_gen: v7x
topology: tpu7x:2x2x1
jax: 0.10.0
libtpu: 0.0.40
codegen_flags: <defaults>
</compile_context>

<pallas_src>
import functools

import jax
import jax.numpy as jnp
from jax.experimental import pallas as pl
from jax.experimental.pallas import tpu as pltpu


# ---------------------------------------------------------------------------
# pallas_call helper
# ---------------------------------------------------------------------------
def _full_spec(shape):
    nd = len(shape)
    return pl.BlockSpec(shape, lambda i, _nd=nd: (0,) * _nd)


# ---------------------------------------------------------------------------
# Fused decoder kernel
# ---------------------------------------------------------------------------
def make_decoder_kernel(*, n_conv, n_mlp_linear, eps=1e-5):
    """Build the fused kernel. All loop counts are static (Python) values."""

    def kernel(*refs):
        out_ref = refs[-1]
        refs = refs[:-1]
        i0 = 0
        l_ref = refs[i0]; i0 += 1
        skip_refs = refs[i0:i0 + n_conv]; i0 += n_conv
        mlp_refs = refs[i0:i0 + 2 * n_mlp_linear]; i0 += 2 * n_mlp_linear
        conv_refs = refs[i0:i0 + 5 * n_conv]; i0 += 5 * n_conv
        mf_ref, bf_ref = refs[i0], refs[i0 + 1]

        # ---- latent MLP: Linear -> ReLU -> [Linear -> ReLU]*n_layers -> Linear ----
        h = l_ref[...].astype(jnp.float32)                         # (B, D)
        for i in range(n_mlp_linear):
            w = mlp_refs[2 * i][...]                               # (din, dout)
            b = mlp_refs[2 * i + 1][...]                           # (1, dout)
            h = jnp.dot(h, w, preferred_element_type=jnp.float32) + b
            if i < n_mlp_linear - 1:
                h = jnp.maximum(h, 0.0)                            # ReLU

        # h already IS x.view(B, C, L) in flat (B, C*L) layout -> no reorg needed.
        x = h                                                      # (B, C*L)

        # ---- conv blocks: x = ReLU(BN(conv(x + skip))) ----
        for i in range(n_conv):
            M = conv_refs[5 * i][...]                              # (cin*L, cout*L)
            bias = conv_refs[5 * i + 1][...]                       # (1, cout*L)
            gamma = conv_refs[5 * i + 2][...]                      # (1, cout*L)
            beta = conv_refs[5 * i + 3][...]                       # (1, cout*L)
            P = conv_refs[5 * i + 4][...]                          # (cout*L, cout*L)

            z = x + skip_refs[i][...].astype(jnp.float32)          # (B, cin*L)
            # circular conv over all batches = one MXU matmul against the banded matrix
            y = jnp.dot(z, M, preferred_element_type=jnp.float32) + bias   # (B, cout*L)

            # BatchNorm1d (training): per-channel stats over (batch, length).
            # P is block-diagonal with 1/(B*L) inside each channel's LxL block, so a
            # single matmul both reduces over the channel's L lanes and broadcasts back.
            s = jnp.sum(y, axis=0, keepdims=True)                  # (1, cout*L)
            mean = jnp.dot(s, P, preferred_element_type=jnp.float32)
            yc = y - mean
            s2 = jnp.sum(yc * yc, axis=0, keepdims=True)
            var = jnp.dot(s2, P, preferred_element_type=jnp.float32)   # biased variance
            yn = yc * jax.lax.rsqrt(var + eps) * gamma + beta
            x = jnp.maximum(yn, 0.0)                               # ReLU

        # ---- final conv (no skip, no BN, no activation) ----
        yf = jnp.dot(x, mf_ref[...], preferred_element_type=jnp.float32) + bf_ref[...]
        out_ref[...] = yf.astype(out_ref.dtype)                    # (B, out_ch*L)

    return kernel


# ---------------------------------------------------------------------------
# Parameter init (deterministic, synthetic, PyTorch-like shapes)
# ---------------------------------------------------------------------------
def init_params(key, hc, out_channels, kernel_size, latent_dimension,
                n_layers, hidden_neurons, input_size):
    in_channels = hc[-1]
    n_conv = len(hc)
    keys = iter(jax.random.split(key, 256))

    def lin(din, dout):
        w = jax.random.normal(next(keys), (din, dout), jnp.float32) / jnp.sqrt(din)
        b = 0.01 * jax.random.normal(next(keys), (1, dout), jnp.float32)
        return w, b

    mlp = []
    mlp += list(lin(latent_dimension, hidden_neurons))
    for _ in range(n_layers):
        mlp += list(lin(hidden_neurons, hidden_neurons))
    mlp += list(lin(hidden_neurons, in_channels * input_size))

    def conv(cin, cout):
        w = jax.random.normal(next(keys), (cout, cin, kernel_size),
                              jnp.float32) / jnp.sqrt(cin * kernel_size)
        b = 0.01 * jax.random.normal(next(keys), (cout,), jnp.float32)
        return w, b

    conv_blocks = []
    # block -1: hc[-1] -> hc[-1], BN + act
    w, b = conv(hc[-1], hc[-1])
    conv_blocks.append(dict(w=w, b=b,
                            gamma=jnp.ones((hc[-1],), jnp.float32),
                            beta=jnp.zeros((hc[-1],), jnp.float32)))
    for i in range(n_conv - 1):
        cin, cout = hc[-i - 1], hc[-i - 2]
        w, b = conv(cin, cout)
        conv_blocks.append(dict(w=w, b=b,
                                gamma=jnp.ones((cout,), jnp.float32),
                                beta=jnp.zeros((cout,), jnp.float32)))
    wf, bf = conv(hc[0], out_channels)
    return dict(mlp=mlp, conv_blocks=conv_blocks, final_conv=dict(w=wf, b=bf))


# ---------------------------------------------------------------------------
# Forward: one fused pallas_call (wrapper does only layout-free parameter folding)
# ---------------------------------------------------------------------------
def decoder1d_forward(params, l, outputs, *, hc, kernel_size, input_size):
    B = l.shape[0]
    L = input_size
    n_conv = len(hc)
    mlp = params['mlp']
    n_mlp_linear = len(mlp) // 2
    out_channels = params['final_conv']['w'].shape[0]
    eps = 1e-5

    def conv_matrix(w):
        # Fold a circular Conv1d weight (cout, cin, K) into a banded matrix
        # M (cin*L, cout*L) with  y[b, co*L+j] = sum_m x[b, m] * M[m, co*L+j],
        # x in the flat (ci*L + pos) layout (== PyTorch x.view(B, C, L)).
        cout, cin, K = w.shape
        p = (K - 1) // 2
        j = jnp.arange(L)
        t = jnp.arange(K)
        src = (j[None, :] + t[:, None] - p) % L                    # (K, L): source pos
        sel = (jnp.arange(L)[None, :, None] == src[:, None, :]).astype(w.dtype)  # (K,L,L)
        M = jnp.einsum('oit,tmj->imoj', w, sel)                    # (cin, L, cout, L)
        return M.reshape(cin * L, cout * L)

    def bn_matrix(cout):
        ch = jnp.repeat(jnp.arange(cout), L)
        return (ch[:, None] == ch[None, :]).astype(jnp.float32) / (B * L)

    def expand_c(v):                                               # (cout,) -> (1, cout*L)
        return jnp.repeat(v, L)[None, :]

    inputs = [l]
    # skip for block i (flattened to the same (B, C*L) layout; contiguous -> free reshape)
    inputs += [outputs[-i - 1].reshape(B, -1) for i in range(n_conv)]
    inputs += list(mlp)
    for blk in params['conv_blocks']:
        cout = blk['w'].shape[0]
        inputs += [conv_matrix(blk['w']), expand_c(blk['b']),
                   expand_c(blk['gamma']), expand_c(blk['beta']),
                   bn_matrix(cout)]
    inputs += [conv_matrix(params['final_conv']['w']),
               expand_c(params['final_conv']['b'])]

    kernel = make_decoder_kernel(n_conv=n_conv, n_mlp_linear=n_mlp_linear, eps=eps)
    out_shape = jax.ShapeDtypeStruct((B, out_channels * L), jnp.float32)
    y = pl.pallas_call(
        kernel,
        out_shape=out_shape,
        grid=(1,),
        in_specs=[_full_spec(a.shape) for a in inputs],
        out_specs=_full_spec(out_shape.shape),
        compiler_params=pltpu.CompilerParams(
            dimension_semantics=("arbitrary",)),
    )(*inputs)
    return y.reshape(B, out_channels, L)


# ---------------------------------------------------------------------------
# Pure-JAX reference (same semantics) for a sanity check
# ---------------------------------------------------------------------------
def reference_forward(params, l, outputs, *, hc, kernel_size, input_size, eps=1e-5):
    B = l.shape[0]
    C = hc[-1]
    L = input_size
    K = kernel_size
    p = (K - 1) // 2
    mlp = params['mlp']
    nlin = len(mlp) // 2
    h = l
    for i in range(nlin):
        h = h @ mlp[2 * i] + mlp[2 * i + 1]
        if i < nlin - 1:
            h = jnp.maximum(h, 0.0)
    x = h.reshape(B, C, L)

    def circ_conv(x, w, b):                                        # x (B,cin,L), w (cout,cin,K)
        xp = jnp.concatenate([x[..., L - p:], x, x[..., :p]], axis=-1) if p > 0 else x
        y = jnp.stack([jnp.einsum('bis,ois->bo', xp[..., j:j + K], w)
                       for j in range(L)], axis=-1)                # (B, cout, L)
        return y + b[None, :, None]

    for i in range(len(hc)):
        blk = params['conv_blocks'][i]
        z = x + outputs[-i - 1]
        y = circ_conv(z, blk['w'], blk['b'])
        mean = jnp.mean(y, axis=(0, 2), keepdims=True)
        var = jnp.mean((y - mean) ** 2, axis=(0, 2), keepdims=True)
        yn = (y - mean) * jax.lax.rsqrt(var + eps) \
            * blk['gamma'][None, :, None] + blk['beta'][None, :, None]
        x = jnp.maximum(yn, 0.0)
    fc = params['final_conv']
    return circ_conv(x, fc['w'], fc['b'])


# ---------------------------------------------------------------------------
if __name__ == "__main__":
    key = jax.random.PRNGKey(0)

    B = 2
    hc = (8, 8)                 # equal channels (see BatchNorm note above)
    out_channels = 4
    kernel_size = 3
    latent_dimension = 16
    n_layers = 2
    hidden_neurons = 32
    input_size = 16

    k_param, k_l, k_s1, k_s2 = jax.random.split(key, 4)
    params = init_params(k_param, hc, out_channels, kernel_size,
                         latent_dimension, n_layers, hidden_neurons, input_size)

    l = jax.random.normal(k_l, (B, latent_dimension), jnp.float32)
    # encoder skip connections; outputs[-1] feeds block -1, outputs[-2] feeds block 0
    outputs = [
        jax.random.normal(k_s1, (B, hc[-1], input_size), jnp.float32),
        jax.random.normal(k_s2, (B, hc[-1], input_size), jnp.float32),
    ]

    fwd = jax.jit(functools.partial(decoder1d_forward, hc=hc,
                                    kernel_size=kernel_size,
                                    input_size=input_size))
    y = fwd(params, l, outputs)
    jax.block_until_ready(y)
    assert y.shape == (B, out_channels, input_size), y.shape
    assert bool(jnp.all(jnp.isfinite(y)))

    y_ref = reference_forward(params, l, outputs, hc=hc,
                              kernel_size=kernel_size, input_size=input_size)
    max_err = float(jnp.max(jnp.abs(y - y_ref)))
    assert max_err < 2e-2, f"kernel vs reference mismatch: max |err| = {max_err}"

    print("KERNEL_OK")
</pallas_src>

<mosaic_0001>
module attributes {stable_mosaic.version = 11 : i64} {
  func.func @kernel(%arg0: i32, %arg1: memref<2x16xf32, #tpu.memory_space<vmem>>, %arg2: memref<2x128xf32, #tpu.memory_space<vmem>>, %arg3: memref<2x128xf32, #tpu.memory_space<vmem>>, %arg4: memref<16x32xf32, #tpu.memory_space<vmem>>, %arg5: memref<1x32xf32, #tpu.memory_space<vmem>>, %arg6: memref<32x32xf32, #tpu.memory_space<vmem>>, %arg7: memref<1x32xf32, #tpu.memory_space<vmem>>, %arg8: memref<32x32xf32, #tpu.memory_space<vmem>>, %arg9: memref<1x32xf32, #tpu.memory_space<vmem>>, %arg10: memref<32x128xf32, #tpu.memory_space<vmem>>, %arg11: memref<1x128xf32, #tpu.memory_space<vmem>>, %arg12: memref<128x128xf32, #tpu.memory_space<vmem>>, %arg13: memref<1x128xf32, #tpu.memory_space<vmem>>, %arg14: memref<1x128xf32, #tpu.memory_space<vmem>>, %arg15: memref<1x128xf32, #tpu.memory_space<vmem>>, %arg16: memref<128x128xf32, #tpu.memory_space<vmem>>, %arg17: memref<128x128xf32, #tpu.memory_space<vmem>>, %arg18: memref<1x128xf32, #tpu.memory_space<vmem>>, %arg19: memref<1x128xf32, #tpu.memory_space<vmem>>, %arg20: memref<1x128xf32, #tpu.memory_space<vmem>>, %arg21: memref<128x128xf32, #tpu.memory_space<vmem>>, %arg22: memref<128x64xf32, #tpu.memory_space<vmem>>, %arg23: memref<1x64xf32, #tpu.memory_space<vmem>>, %arg24: memref<2x64xf32, #tpu.memory_space<vmem>>) attributes {dimension_semantics = [#tpu.dimension_semantics<arbitrary>], iteration_bounds = array<i64: 1>, scalar_prefetch = 0 : i64, scratch_operands = 0 : i64, tpu.core_type = #tpu.core_type<tc>, window_params = [{pipeline_mode = #tpu.pipeline_mode<synchronous>, transform_indices = @transform_0, window_bounds = array<i64: 2, 16>}, {pipeline_mode = #tpu.pipeline_mode<synchronous>, transform_indices = @transform_1, window_bounds = array<i64: 2, 128>}, {pipeline_mode = #tpu.pipeline_mode<synchronous>, transform_indices = @transform_2, window_bounds = array<i64: 2, 128>}, {pipeline_mode = #tpu.pipeline_mode<synchronous>, transform_indices = @transform_3, window_bounds = array<i64: 16, 32>}, {pipeline_mode = #tpu.pipeline_mode<synchronous>, transform_indices = @transform_4, window_bounds = array<i64: 1, 32>}, {pipeline_mode = #tpu.pipeline_mode<synchronous>, transform_indices = @transform_5, window_bounds = array<i64: 32, 32>}, {pipeline_mode = #tpu.pipeline_mode<synchronous>, transform_indices = @transform_6, window_bounds = array<i64: 1, 32>}, {pipeline_mode = #tpu.pipeline_mode<synchronous>, transform_indices = @transform_7, window_bounds = array<i64: 32, 32>}, {pipeline_mode = #tpu.pipeline_mode<synchronous>, transform_indices = @transform_8, window_bounds = array<i64: 1, 32>}, {pipeline_mode = #tpu.pipeline_mode<synchronous>, transform_indices = @transform_9, window_bounds = array<i64: 32, 128>}, {pipeline_mode = #tpu.pipeline_mode<synchronous>, transform_indices = @transform_10, window_bounds = array<i64: 1, 128>}, {pipeline_mode = #tpu.pipeline_mode<synchronous>, transform_indices = @transform_11, window_bounds = array<i64: 128, 128>}, {pipeline_mode = #tpu.pipeline_mode<synchronous>, transform_indices = @transform_12, window_bounds = array<i64: 1, 128>}, {pipeline_mode = #tpu.pipeline_mode<synchronous>, transform_indices = @transform_13, window_bounds = array<i64: 1, 128>}, {pipeline_mode = #tpu.pipeline_mode<synchronous>, transform_indices = @transform_14, window_bounds = array<i64: 1, 128>}, {pipeline_mode = #tpu.pipeline_mode<synchronous>, transform_indices = @transform_15, window_bounds = array<i64: 128, 128>}, {pipeline_mode = #tpu.pipeline_mode<synchronous>, transform_indices = @transform_16, window_bounds = array<i64: 128, 128>}, {pipeline_mode = #tpu.pipeline_mode<synchronous>, transform_indices = @transform_17, window_bounds = array<i64: 1, 128>}, {pipeline_mode = #tpu.pipeline_mode<synchronous>, transform_indices = @transform_18, window_bounds = array<i64: 1, 128>}, {pipeline_mode = #tpu.pipeline_mode<synchronous>, transform_indices = @transform_19, window_bounds = array<i64: 1, 128>}, {pipeline_mode = #tpu.pipeline_mode<synchronous>, transform_indices = @transform_20, window_bounds = array<i64: 128, 128>}, {pipeline_mode = #tpu.pipeline_mode<synchronous>, transform_indices = @transform_21, window_bounds = array<i64: 128, 64>}, {pipeline_mode = #tpu.pipeline_mode<synchronous>, transform_indices = @transform_22, window_bounds = array<i64: 1, 64>}, {pipeline_mode = #tpu.pipeline_mode<synchronous>, transform_indices = @transform_23, window_bounds = array<i64: 2, 64>}]} {
    %c0 = arith.constant 0 : index
    %c0_0 = arith.constant 0 : index
    %0 = vector.load %arg1[%c0, %c0_0] : memref<2x16xf32, #tpu.memory_space<vmem>>, vector<2x16xf32>
    %c0_1 = arith.constant 0 : index
    %c0_2 = arith.constant 0 : index
    %1 = vector.load %arg4[%c0_1, %c0_2] : memref<16x32xf32, #tpu.memory_space<vmem>>, vector<16x32xf32>
    %c0_3 = arith.constant 0 : index
    %c0_4 = arith.constant 0 : index
    %2 = vector.load %arg5[%c0_3, %c0_4] : memref<1x32xf32, #tpu.memory_space<vmem>>, vector<1x32xf32>
    %cst = arith.constant dense<0.000000e+00> : vector<2x32xf32>
    %3 = tpu.matmul %0, %1, %cst {dimension_numbers = #tpu.dot_dimension_numbers<[1], [0], [0], [1], [0, 0, 1, 1], [], []>} : vector<2x16xf32>, vector<16x32xf32>, vector<2x32xf32> -> vector<2x32xf32>
    %4 = vector.broadcast %2 : vector<1x32xf32> to vector<2x32xf32>
    %5 = arith.addf %3, %4 : vector<2x32xf32>
    %cst_5 = arith.constant 0.000000e+00 : f32
    %6 = vector.broadcast %cst_5 : f32 to vector<2x32xf32>
    %7 = arith.maximumf %5, %6 : vector<2x32xf32>
    %c0_6 = arith.constant 0 : index
    %c0_7 = arith.constant 0 : index
    %8 = vector.load %arg6[%c0_6, %c0_7] : memref<32x32xf32, #tpu.memory_space<vmem>>, vector<32x32xf32>
    %c0_8 = arith.constant 0 : index
    %c0_9 = arith.constant 0 : index
    %9 = vector.load %arg7[%c0_8, %c0_9] : memref<1x32xf32, #tpu.memory_space<vmem>>, vector<1x32xf32>
    %cst_10 = arith.constant dense<0.000000e+00> : vector<2x32xf32>
    %10 = tpu.matmul %7, %8, %cst_10 {dimension_numbers = #tpu.dot_dimension_numbers<[1], [0], [0], [1], [0, 0, 1, 1], [], []>} : vector<2x32xf32>, vector<32x32xf32>, vector<2x32xf32> -> vector<2x32xf32>
    %11 = vector.broadcast %9 : vector<1x32xf32> to vector<2x32xf32>
    %12 = arith.addf %10, %11 : vector<2x32xf32>
    %cst_11 = arith.constant 0.000000e+00 : f32
    %13 = vector.broadcast %cst_11 : f32 to vector<2x32xf32>
    %14 = arith.maximumf %12, %13 : vector<2x32xf32>
    %c0_12 = arith.constant 0 : index
    %c0_13 = arith.constant 0 : index
    %15 = vector.load %arg8[%c0_12, %c0_13] : memref<32x32xf32, #tpu.memory_space<vmem>>, vector<32x32xf32>
    %c0_14 = arith.constant 0 : index
    %c0_15 = arith.constant 0 : index
    %16 = vector.load %arg9[%c0_14, %c0_15] : memref<1x32xf32, #tpu.memory_space<vmem>>, vector<1x32xf32>
    %cst_16 = arith.constant dense<0.000000e+00> : vector<2x32xf32>
    %17 = tpu.matmul %14, %15, %cst_16 {dimension_numbers = #tpu.dot_dimension_numbers<[1], [0], [0], [1], [0, 0, 1, 1], [], []>} : vector<2x32xf32>, vector<32x32xf32>, vector<2x32xf32> -> vector<2x32xf32>
    %18 = vector.broadcast %16 : vector<1x32xf32> to vector<2x32xf32>
    %19 = arith.addf %17, %18 : vector<2x32xf32>
    %cst_17 = arith.constant 0.000000e+00 : f32
    %20 = vector.broadcast %cst_17 : f32 to vector<2x32xf32>
    %21 = arith.maximumf %19, %20 : vector<2x32xf32>
    %c0_18 = arith.constant 0 : index
    %c0_19 = arith.constant 0 : index
    %22 = vector.load %arg10[%c0_18, %c0_19] : memref<32x128xf32, #tpu.memory_space<vmem>>, vector<32x128xf32>
    %c0_20 = arith.constant 0 : index
    %c0_21 = arith.constant 0 : index
    %23 = vector.load %arg11[%c0_20, %c0_21] : memref<1x128xf32, #tpu.memory_space<vmem>>, vector<1x128xf32>
    %cst_22 = arith.constant dense<0.000000e+00> : vector<2x128xf32>
    %24 = tpu.matmul %21, %22, %cst_22 {dimension_numbers = #tpu.dot_dimension_numbers<[1], [0], [0], [1], [0, 0, 1, 1], [], []>} : vector<2x32xf32>, vector<32x128xf32>, vector<2x128xf32> -> vector<2x128xf32>
    %25 = vector.broadcast %23 : vector<1x128xf32> to vector<2x128xf32>
    %26 = arith.addf %24, %25 : vector<2x128xf32>
    %c0_23 = arith.constant 0 : index
    %c0_24 = arith.constant 0 : index
    %27 = vector.load %arg12[%c0_23, %c0_24] : memref<128x128xf32, #tpu.memory_space<vmem>>, vector<128x128xf32>
    %c0_25 = arith.constant 0 : index
    %c0_26 = arith.constant 0 : index
    %28 = vector.load %arg13[%c0_25, %c0_26] : memref<1x128xf32, #tpu.memory_space<vmem>>, vector<1x128xf32>
    %c0_27 = arith.constant 0 : index
    %c0_28 = arith.constant 0 : index
    %29 = vector.load %arg14[%c0_27, %c0_28] : memref<1x128xf32, #tpu.memory_space<vmem>>, vector<1x128xf32>
    %c0_29 = arith.constant 0 : index
    %c0_30 = arith.constant 0 : index
    %30 = vector.load %arg15[%c0_29, %c0_30] : memref<1x128xf32, #tpu.memory_space<vmem>>, vector<1x128xf32>
    %c0_31 = arith.constant 0 : index
    %c0_32 = arith.constant 0 : index
    %31 = vector.load %arg16[%c0_31, %c0_32] : memref<128x128xf32, #tpu.memory_space<vmem>>, vector<128x128xf32>
    %c0_33 = arith.constant 0 : index
    %c0_34 = arith.constant 0 : index
    %32 = vector.load %arg2[%c0_33, %c0_34] : memref<2x128xf32, #tpu.memory_space<vmem>>, vector<2x128xf32>
    %33 = arith.addf %26, %32 : vector<2x128xf32>
    %cst_35 = arith.constant dense<0.000000e+00> : vector<2x128xf32>
    %34 = tpu.matmul %33, %27, %cst_35 {dimension_numbers = #tpu.dot_dimension_numbers<[1], [0], [0], [1], [0, 0, 1, 1], [], []>} : vector<2x128xf32>, vector<128x128xf32>, vector<2x128xf32> -> vector<2x128xf32>
    %35 = vector.broadcast %28 : vector<1x128xf32> to vector<2x128xf32>
    %36 = arith.addf %34, %35 : vector<2x128xf32>
    %cst_36 = arith.constant dense<0.000000e+00> : vector<128xf32>
    %37 = vector.multi_reduction <add>, %36, %cst_36 [0] : vector<2x128xf32> to vector<128xf32>
    %38 = vector.shape_cast %37 : vector<128xf32> to vector<1x128xf32>
    %cst_37 = arith.constant dense<0.000000e+00> : vector<1x128xf32>
    %39 = tpu.matmul %38, %31, %cst_37 {dimension_numbers = #tpu.dot_dimension_numbers<[1], [0], [0], [1], [0, 0, 1, 1], [], []>} : vector<1x128xf32>, vector<128x128xf32>, vector<1x128xf32> -> vector<1x128xf32>
    %40 = vector.broadcast %39 : vector<1x128xf32> to vector<2x128xf32>
    %41 = arith.subf %36, %40 : vector<2x128xf32>
    %42 = arith.mulf %41, %41 : vector<2x128xf32>
    %cst_38 = arith.constant dense<0.000000e+00> : vector<128xf32>
    %43 = vector.multi_reduction <add>, %42, %cst_38 [0] : vector<2x128xf32> to vector<128xf32>
    %44 = vector.shape_cast %43 : vector<128xf32> to vector<1x128xf32>
    %cst_39 = arith.constant dense<0.000000e+00> : vector<1x128xf32>
    %45 = tpu.matmul %44, %31, %cst_39 {dimension_numbers = #tpu.dot_dimension_numbers<[1], [0], [0], [1], [0, 0, 1, 1], [], []>} : vector<1x128xf32>, vector<128x128xf32>, vector<1x128xf32> -> vector<1x128xf32>
    %cst_40 = arith.constant 9.99999974E-6 : f32
    %46 = vector.broadcast %cst_40 : f32 to vector<1x128xf32>
    %47 = arith.addf %45, %46 : vector<1x128xf32>
    %48 = math.rsqrt %47 : vector<1x128xf32>
    %49 = vector.broadcast %48 : vector<1x128xf32> to vector<2x128xf32>
    %50 = arith.mulf %41, %49 : vector<2x128xf32>
    %51 = vector.broadcast %29 : vector<1x128xf32> to vector<2x128xf32>
    %52 = arith.mulf %50, %51 : vector<2x128xf32>
    %53 = vector.broadcast %30 : vector<1x128xf32> to vector<2x128xf32>
    %54 = arith.addf %52, %53 : vector<2x128xf32>
    %cst_41 = arith.constant 0.000000e+00 : f32
    %55 = vector.broadcast %cst_41 : f32 to vector<2x128xf32>
    %56 = arith.maximumf %54, %55 : vector<2x128xf32>
    %c0_42 = arith.constant 0 : index
    %c0_43 = arith.constant 0 : index
    %57 = vector.load %arg17[%c0_42, %c0_43] : memref<128x128xf32, #tpu.memory_space<vmem>>, vector<128x128xf32>
    %c0_44 = arith.constant 0 : index
    %c0_45 = arith.constant 0 : index
    %58 = vector.load %arg18[%c0_44, %c0_45] : memref<1x128xf32, #tpu.memory_space<vmem>>, vector<1x128xf32>
    %c0_46 = arith.constant 0 : index
    %c0_47 = arith.constant 0 : index
    %59 = vector.load %arg19[%c0_46, %c0_47] : memref<1x128xf32, #tpu.memory_space<vmem>>, vector<1x128xf32>
    %c0_48 = arith.constant 0 : index
    %c0_49 = arith.constant 0 : index
    %60 = vector.load %arg20[%c0_48, %c0_49] : memref<1x128xf32, #tpu.memory_space<vmem>>, vector<1x128xf32>
    %c0_50 = arith.constant 0 : index
    %c0_51 = arith.constant 0 : index
    %61 = vector.load %arg21[%c0_50, %c0_51] : memref<128x128xf32, #tpu.memory_space<vmem>>, vector<128x128xf32>
    %c0_52 = arith.constant 0 : index
    %c0_53 = arith.constant 0 : index
    %62 = vector.load %arg3[%c0_52, %c0_53] : memref<2x128xf32, #tpu.memory_space<vmem>>, vector<2x128xf32>
    %63 = arith.addf %56, %62 : vector<2x128xf32>
    %cst_54 = arith.constant dense<0.000000e+00> : vector<2x128xf32>
    %64 = tpu.matmul %63, %57, %cst_54 {dimension_numbers = #tpu.dot_dimension_numbers<[1], [0], [0], [1], [0, 0, 1, 1], [], []>} : vector<2x128xf32>, vector<128x128xf32>, vector<2x128xf32> -> vector<2x128xf32>
    %65 = vector.broadcast %58 : vector<1x128xf32> to vector<2x128xf32>
    %66 = arith.addf %64, %65 : vector<2x128xf32>
    %cst_55 = arith.constant dense<0.000000e+00> : vector<128xf32>
    %67 = vector.multi_reduction <add>, %66, %cst_55 [0] : vector<2x128xf32> to vector<128xf32>
    %68 = vector.shape_cast %67 : vector<128xf32> to vector<1x128xf32>
    %cst_56 = arith.constant dense<0.000000e+00> : vector<1x128xf32>
    %69 = tpu.matmul %68, %61, %cst_56 {dimension_numbers = #tpu.dot_dimension_numbers<[1], [0], [0], [1], [0, 0, 1, 1], [], []>} : vector<1x128xf32>, vector<128x128xf32>, vector<1x128xf32> -> vector<1x128xf32>
    %70 = vector.broadcast %69 : vector<1x128xf32> to vector<2x128xf32>
    %71 = arith.subf %66, %70 : vector<2x128xf32>
    %72 = arith.mulf %71, %71 : vector<2x128xf32>
    %cst_57 = arith.constant dense<0.000000e+00> : vector<128xf32>
    %73 = vector.multi_reduction <add>, %72, %cst_57 [0] : vector<2x128xf32> to vector<128xf32>
    %74 = vector.shape_cast %73 : vector<128xf32> to vector<1x128xf32>
    %cst_58 = arith.constant dense<0.000000e+00> : vector<1x128xf32>
    %75 = tpu.matmul %74, %61, %cst_58 {dimension_numbers = #tpu.dot_dimension_numbers<[1], [0], [0], [1], [0, 0, 1, 1], [], []>} : vector<1x128xf32>, vector<128x128xf32>, vector<1x128xf32> -> vector<1x128xf32>
    %cst_59 = arith.constant 9.99999974E-6 : f32
    %76 = vector.broadcast %cst_59 : f32 to vector<1x128xf32>
    %77 = arith.addf %75, %76 : vector<1x128xf32>
    %78 = math.rsqrt %77 : vector<1x128xf32>
    %79 = vector.broadcast %78 : vector<1x128xf32> to vector<2x128xf32>
    %80 = arith.mulf %71, %79 : vector<2x128xf32>
    %81 = vector.broadcast %59 : vector<1x128xf32> to vector<2x128xf32>
    %82 = arith.mulf %80, %81 : vector<2x128xf32>
    %83 = vector.broadcast %60 : vector<1x128xf32> to vector<2x128xf32>
    %84 = arith.addf %82, %83 : vector<2x128xf32>
    %cst_60 = arith.constant 0.000000e+00 : f32
    %85 = vector.broadcast %cst_60 : f32 to vector<2x128xf32>
    %86 = arith.maximumf %84, %85 : vector<2x128xf32>
    %c0_61 = arith.constant 0 : index
    %c0_62 = arith.constant 0 : index
    %87 = vector.load %arg22[%c0_61, %c0_62] : memref<128x64xf32, #tpu.memory_space<vmem>>, vector<128x64xf32>
    %cst_63 = arith.constant dense<0.000000e+00> : vector<2x64xf32>
    %88 = tpu.matmul %86, %87, %cst_63 {dimension_numbers = #tpu.dot_dimension_numbers<[1], [0], [0], [1], [0, 0, 1, 1], [], []>} : vector<2x128xf32>, vector<128x64xf32>, vector<2x64xf32> -> vector<2x64xf32>
    %c0_64 = arith.constant 0 : index
    %c0_65 = arith.constant 0 : index
    %89 = vector.load %arg23[%c0_64, %c0_65] : memref<1x64xf32, #tpu.memory_space<vmem>>, vector<1x64xf32>
    %90 = vector.broadcast %89 : vector<1x64xf32> to vector<2x64xf32>
    %91 = arith.addf %88, %90 : vector<2x64xf32>
    %c0_66 = arith.constant 0 : index
    %c0_67 = arith.constant 0 : index
    %92 = vector.load %arg24[%c0_66, %c0_67] : memref<2x64xf32, #tpu.memory_space<vmem>>, vector<2x64xf32>
    tpu.vector_store %arg24[%c0_66, %c0_67], %91 {strides = array<i32>} : memref<2x64xf32, #tpu.memory_space<vmem>>, vector<2x64xf32>,
    return
  }
  func.func @transform_0(%arg0: i32) -> (i32, i32) {
    %c0_i32 = arith.constant 0 : i32
    %c0_i32_0 = arith.constant 0 : i32
    %c0_i32_1 = arith.constant 0 : i32
    return %c0_i32, %c0_i32_0 : i32, i32
  }
  func.func @transform_1(%arg0: i32) -> (i32, i32) {
    %c0_i32 = arith.constant 0 : i32
    %c0_i32_0 = arith.constant 0 : i32
    %c0_i32_1 = arith.constant 0 : i32
    return %c0_i32, %c0_i32_0 : i32, i32
  }
  func.func @transform_2(%arg0: i32) -> (i32, i32) {
    %c0_i32 = arith.constant 0 : i32
    %c0_i32_0 = arith.constant 0 : i32
    %c0_i32_1 = arith.constant 0 : i32
    return %c0_i32, %c0_i32_0 : i32, i32
  }
  func.func @transform_3(%arg0: i32) -> (i32, i32) {
    %c0_i32 = arith.constant 0 : i32
    %c0_i32_0 = arith.constant 0 : i32
    %c0_i32_1 = arith.constant 0 : i32
    return %c0_i32, %c0_i32_0 : i32, i32
  }
  func.func @transform_4(%arg0: i32) -> (i32, i32) {
    %c0_i32 = arith.constant 0 : i32
    %c0_i32_0 = arith.constant 0 : i32
    %c0_i32_1 = arith.constant 0 : i32
    return %c0_i32, %c0_i32_0 : i32, i32
  }
  func.func @transform_5(%arg0: i32) -> (i32, i32) {
    %c0_i32 = arith.constant 0 : i32
    %c0_i32_0 = arith.constant 0 : i32
    %c0_i32_1 = arith.constant 0 : i32
    return %c0_i32, %c0_i32_0 : i32, i32
  }
  func.func @transform_6(%arg0: i32) -> (i32, i32) {
    %c0_i32 = arith.constant 0 : i32
    %c0_i32_0 = arith.constant 0 : i32
    %c0_i32_1 = arith.constant 0 : i32
    return %c0_i32, %c0_i32_0 : i32, i32
  }
  func.func @transform_7(%arg0: i32) -> (i32, i32) {
    %c0_i32 = arith.constant 0 : i32
    %c0_i32_0 = arith.constant 0 : i32
    %c0_i32_1 = arith.constant 0 : i32
    return %c0_i32, %c0_i32_0 : i32, i32
  }
  func.func @transform_8(%arg0: i32) -> (i32, i32) {
    %c0_i32 = arith.constant 0 : i32
    %c0_i32_0 = arith.constant 0 : i32
    %c0_i32_1 = arith.constant 0 : i32
    return %c0_i32, %c0_i32_0 : i32, i32
  }
  func.func @transform_9(%arg0: i32) -> (i32, i32) {
    %c0_i32 = arith.constant 0 : i32
    %c0_i32_0 = arith.constant 0 : i32
    %c0_i32_1 = arith.constant 0 : i32
    return %c0_i32, %c0_i32_0 : i32, i32
  }
  func.func @transform_10(%arg0: i32) -> (i32, i32) {
    %c0_i32 = arith.constant 0 : i32
    %c0_i32_0 = arith.constant 0 : i32
    %c0_i32_1 = arith.constant 0 : i32
    return %c0_i32, %c0_i32_0 : i32, i32
  }
  func.func @transform_11(%arg0: i32) -> (i32, i32) {
    %c0_i32 = arith.constant 0 : i32
    %c0_i32_0 = arith.constant 0 : i32
    %c0_i32_1 = arith.constant 0 : i32
    return %c0_i32, %c0_i32_0 : i32, i32
  }
  func.func @transform_12(%arg0: i32) -> (i32, i32) {
    %c0_i32 = arith.constant 0 : i32
    %c0_i32_0 = arith.constant 0 : i32
    %c0_i32_1 = arith.constant 0 : i32
    return %c0_i32, %c0_i32_0 : i32, i32
  }
  func.func @transform_13(%arg0: i32) -> (i32, i32) {
    %c0_i32 = arith.constant 0 : i32
    %c0_i32_0 = arith.constant 0 : i32
    %c0_i32_1 = arith.constant 0 : i32
    return %c0_i32, %c0_i32_0 : i32, i32
  }
  func.func @transform_14(%arg0: i32) -> (i32, i32) {
    %c0_i32 = arith.constant 0 : i32
    %c0_i32_0 = arith.constant 0 : i32
    %c0_i32_1 = arith.constant 0 : i32
    return %c0_i32, %c0_i32_0 : i32, i32
  }
  func.func @transform_15(%arg0: i32) -> (i32, i32) {
    %c0_i32 = arith.constant 0 : i32
    %c0_i32_0 = arith.constant 0 : i32
    %c0_i32_1 = arith.constant 0 : i32
    return %c0_i32, %c0_i32_0 : i32, i32
  }
  func.func @transform_16(%arg0: i32) -> (i32, i32) {
    %c0_i32 = arith.constant 0 : i32
    %c0_i32_0 = arith.constant 0 : i32
    %c0_i32_1 = arith.constant 0 : i32
    return %c0_i32, %c0_i32_0 : i32, i32
  }
  func.func @transform_17(%arg0: i32) -> (i32, i32) {
    %c0_i32 = arith.constant 0 : i32
    %c0_i32_0 = arith.constant 0 : i32
    %c0_i32_1 = arith.constant 0 : i32
    return %c0_i32, %c0_i32_0 : i32, i32
  }
  func.func @transform_18(%arg0: i32) -> (i32, i32) {
    %c0_i32 = arith.constant 0 : i32
    %c0_i32_0 = arith.constant 0 : i32
    %c0_i32_1 = arith.constant 0 : i32
    return %c0_i32, %c0_i32_0 : i32, i32
  }
  func.func @transform_19(%arg0: i32) -> (i32, i32) {
    %c0_i32 = arith.constant 0 : i32
    %c0_i32_0 = arith.constant 0 : i32
    %c0_i32_1 = arith.constant 0 : i32
    return %c0_i32, %c0_i32_0 : i32, i32
  }
  func.func @transform_20(%arg0: i32) -> (i32, i32) {
    %c0_i32 = arith.constant 0 : i32
    %c0_i32_0 = arith.constant 0 : i32
    %c0_i32_1 = arith.constant 0 : i32
    return %c0_i32, %c0_i32_0 : i32, i32
  }
  func.func @transform_21(%arg0: i32) -> (i32, i32) {
    %c0_i32 = arith.constant 0 : i32
    %c0_i32_0 = arith.constant 0 : i32
    %c0_i32_1 = arith.constant 0 : i32
    return %c0_i32, %c0_i32_0 : i32, i32
  }
  func.func @transform_22(%arg0: i32) -> (i32, i32) {
    %c0_i32 = arith.constant 0 : i32
    %c0_i32_0 = arith.constant 0 : i32
    %c0_i32_1 = arith.constant 0 : i32
    return %c0_i32, %c0_i32_0 : i32, i32
  }
  func.func @transform_23(%arg0: i32) -> (i32, i32) {
    %c0_i32 = arith.constant 0 : i32
    %c0_i32_0 = arith.constant 0 : i32
    %c0_i32_1 = arith.constant 0 : i32
    return %c0_i32, %c0_i32_0 : i32, i32
  }
}

</mosaic_0001>

<llo_original>
// kernel: eq.45
$region0: #{eq.45}
  %s0 = inlined_call_operand.vmem [shape: s32[8,16], index: 0, kind: input, shape index: {}]
  %s1 = inlined_call_operand.vmem [shape: s32[128], index: 1, kind: output, shape index: {}]
  $region1: #{eq.45} parent=0
    #allocation0 [shape = 'u8[4096]{0}', space=vmem, size = 0x1000, scoped, tag = 'scoped mem for output reshape']
    %v2 = vld [vmem:[%s0] sm:$0x1]
    %vm3 = vcmask 130048
    %4 = vst.msk [vmem:[#allocation0] sm:$0x1] %vm3, %v2
    %s5 = scalar_lea.vmem %s0, 7
    %v6 = vld [vmem:[%s5] sm:$0x1]
    %7 = vrot.lane.b32.xlu0 %v6, 112
    %v8 = vpop.permute.xlu0 %7
    %vm9 = vcmask 1048448
    %10 = vst.msk [vmem:[#allocation0] sm:$0x1] %vm9, %v8
    %s11 = scalar_lea.vmem %s0, 6
    %v12 = vld [vmem:[%s11] sm:$0x1]
    %13 = vrot.lane.b32.xlu0 %v12, 96
    %v14 = vpop.permute.xlu0 %13
    %vm15 = vcmask 917248
    %16 = vst.msk [vmem:[#allocation0] sm:$0x1] %vm15, %v14
    %s17 = scalar_lea.vmem %s0, 5
    %v18 = vld [vmem:[%s17] sm:$0x1]
    %19 = vrot.lane.b32.xlu0 %v18, 80
    %v20 = vpop.permute.xlu0 %19
    %vm21 = vcmask 786048
    %22 = vst.msk [vmem:[#allocation0] sm:$0x1] %vm21, %v20
    %s23 = scalar_lea.vmem %s0, 4
    %v24 = vld [vmem:[%s23] sm:$0x1]
    %25 = vrot.lane.b32.xlu0 %v24, 64
    %v26 = vpop.permute.xlu0 %25
    %vm27 = vcmask 654848
    %28 = vst.msk [vmem:[#allocation0] sm:$0x1] %vm27, %v26
    %s29 = scalar_lea.vmem %s0, 3
    %v30 = vld [vmem:[%s29] sm:$0x1]
    %31 = vrot.lane.b32.xlu0 %v30, 48
    %v32 = vpop.permute.xlu0 %31
    %vm33 = vcmask 523648
    %34 = vst.msk [vmem:[#allocation0] sm:$0x1] %vm33, %v32
    %s35 = scalar_lea.vmem %s0, 2
    %v36 = vld [vmem:[%s35] sm:$0x1]
    %37 = vrot.lane.b32.xlu0 %v36, 32
    %v38 = vpop.permute.xlu0 %37
    %vm39 = vcmask 392448
    %40 = vst.msk [vmem:[#allocation0] sm:$0x1] %vm39, %v38
    %s41 = scalar_lea.vmem %s0, 1
    %v42 = vld [vmem:[%s41] sm:$0x1]
    %43 = vrot.lane.b32.xlu0 %v42, 16
    %v44 = vpop.permute.xlu0 %43
    %vm45 = vcmask 261248
    %46 = vst.msk [vmem:[#allocation0] sm:$0x1] %vm45, %v44
    %s48 = sshllo.u32 0, 1
    %v50 = vld [vmem:[#allocation0] sm:%s48]
    %s51 = sshllo.u32 0, 1
    %52 = vst [vmem:[%s1] sm:%s51] %v50

// kernel: decoder1d_forward.1
$region0: #{decoder1d_forward.1}
  #allocation0 [shape = 'u32[]', space=smem, size = 0x4, offset = 0x4, fixed_abs, tag = 'smem constant byte address 0x4 - core index']
  #allocation1 [shape = 'u32[144,128]{1,0:T(1,128)}', space=vmem, size = 0x12000, scoped, tag = 'internal scratch']
  %s0 = inlined_call_operand.vmem [shape: f32[2,16], index: 0, kind: input, shape index: {}]
  %s1 = inlined_call_operand.vmem [shape: f32[2,128], index: 1, kind: input, shape index: {}]
  %s2 = inlined_call_operand.vmem [shape: f32[2,128], index: 2, kind: input, shape index: {}]
  %s3 = inlined_call_operand.vmem [shape: f32[16,32], index: 3, kind: input, shape index: {}]
  %s4 = inlined_call_operand.vmem [shape: f32[1,32], index: 4, kind: input, shape index: {}]
  %s5 = inlined_call_operand.vmem [shape: f32[32,32], index: 5, kind: input, shape index: {}]
  %s6 = inlined_call_operand.vmem [shape: f32[1,32], index: 6, kind: input, shape index: {}]
  %s7 = inlined_call_operand.vmem [shape: f32[32,32], index: 7, kind: input, shape index: {}]
  %s8 = inlined_call_operand.vmem [shape: f32[1,32], index: 8, kind: input, shape index: {}]
  %s9 = inlined_call_operand.vmem [shape: f32[32,128], index: 9, kind: input, shape index: {}]
  %s10 = inlined_call_operand.vmem [shape: f32[1,128], index: 10, kind: input, shape index: {}]
  %s11 = inlined_call_operand.vmem [shape: f32[128,128], index: 11, kind: input, shape index: {}]
  %s12 = inlined_call_operand.vmem [shape: f32[1,128], index: 12, kind: input, shape index: {}]
  %s13 = inlined_call_operand.vmem [shape: f32[1,128], index: 13, kind: input, shape index: {}]
  %s14 = inlined_call_operand.vmem [shape: f32[1,128], index: 14, kind: input, shape index: {}]
  %s15 = inlined_call_operand.vmem [shape: f32[128,128], index: 15, kind: input, shape index: {}, may-alias: {15,20}]
  %s16 = inlined_call_operand.vmem [shape: f32[128,128], index: 16, kind: input, shape index: {}]
  %s17 = inlined_call_operand.vmem [shape: f32[1,128], index: 17, kind: input, shape index: {}]
  %s18 = inlined_call_operand.vmem [shape: f32[1,128], index: 18, kind: input, shape index: {}]
  %s19 = inlined_call_operand.vmem [shape: f32[1,128], index: 19, kind: input, shape index: {}]
  %s20 = inlined_call_operand.vmem [shape: f32[128,128], index: 20, kind: input, shape index: {}, may-alias: {15,20}]
  %s21 = inlined_call_operand.vmem [shape: f32[128,64], index: 21, kind: input, shape index: {}]
  %s22 = inlined_call_operand.vmem [shape: f32[1,64], index: 22, kind: input, shape index: {}]
  %s23 = inlined_call_operand.vmem [shape: f32[2,64], index: 23, kind: output, shape index: {}]
  %s24 = sld [smem:[#allocation0]]
  $region102: #{decoder1d_forward.1} parent=0
    _
  %s26 = ssub.s32 1, %s24
  %s27 = scalar_select 0, %s26, %s24
  // Predicated region
  $region2: #{decoder1d_forward.1} parent=0 // pred_check
    _
  $region3: #{decoder1d_forward.1} parent=0 // pred_check_branch
    %29 = sbr.rel (0) target = $region5
  $region4: #{decoder1d_forward.1} parent=0 // pred_region
    _
  $region5: #{decoder1d_forward.1} parent=0 // pred_fallthru
    _
  // Predicated region
  $region6: #{decoder1d_forward.1} parent=0 // pred_check
    _
  $region7: #{decoder1d_forward.1} parent=0 // pred_check_branch
    %31 = sbr.rel (0) target = $region9
  $region8: #{decoder1d_forward.1} parent=0 // pred_region
    _
  $region9: #{decoder1d_forward.1} parent=0 // pred_fallthru
    _
  // Predicated region
  $region10: #{decoder1d_forward.1} parent=0 // pred_check
    _
  $region11: #{decoder1d_forward.1} parent=0 // pred_check_branch
    %33 = sbr.rel (0) target = $region13
  $region12: #{decoder1d_forward.1} parent=0 // pred_region
    _
  $region13: #{decoder1d_forward.1} parent=0 // pred_fallthru
    _
  // Predicated region
  $region14: #{decoder1d_forward.1} parent=0 // pred_check
    _
  $region15: #{decoder1d_forward.1} parent=0 // pred_check_branch
    %35 = sbr.rel (0) target = $region17
  $region16: #{decoder1d_forward.1} parent=0 // pred_region
    _
  $region17: #{decoder1d_forward.1} parent=0 // pred_fallthru
    _
  // Predicated region
  $region18: #{decoder1d_forward.1} parent=0 // pred_check
    _
  $region19: #{decoder1d_forward.1} parent=0 // pred_check_branch
    %37 = sbr.rel (0) target = $region21
  $region20: #{decoder1d_forward.1} parent=0 // pred_region
    _
  $region21: #{decoder1d_forward.1} parent=0 // pred_fallthru
    _
  // Predicated region
  $region22: #{decoder1d_forward.1} parent=0 // pred_check
    _
  $region23: #{decoder1d_forward.1} parent=0 // pred_check_branch
    %39 = sbr.rel (0) target = $region25
  $region24: #{decoder1d_forward.1} parent=0 // pred_region
    _
  $region25: #{decoder1d_forward.1} parent=0 // pred_fallthru
    _
  // Predicated region
  $region26: #{decoder1d_forward.1} parent=0 // pred_check
    _
  $region27: #{decoder1d_forward.1} parent=0 // pred_check_branch
    %41 = sbr.rel (0) target = $region29
  $region28: #{decoder1d_forward.1} parent=0 // pred_region
    _
  $region29: #{decoder1d_forward.1} parent=0 // pred_fallthru
    _
  // Predicated region
  $region30: #{decoder1d_forward.1} parent=0 // pred_check
    _
  $region31: #{decoder1d_forward.1} parent=0 // pred_check_branch
    %43 = sbr.rel (0) target = $region33
  $region32: #{decoder1d_forward.1} parent=0 // pred_region
    _
  $region33: #{decoder1d_forward.1} parent=0 // pred_fallthru
    _
  // Predicated region
  $region34: #{decoder1d_forward.1} parent=0 // pred_check
    _
  $region35: #{decoder1d_forward.1} parent=0 // pred_check_branch
    %45 = sbr.rel (0) target = $region37
  $region36: #{decoder1d_forward.1} parent=0 // pred_region
    _
  $region37: #{decoder1d_forward.1} parent=0 // pred_fallthru
    _
  // Predicated region
  $region38: #{decoder1d_forward.1} parent=0 // pred_check
    _
  $region39: #{decoder1d_forward.1} parent=0 // pred_check_branch
    %47 = sbr.rel (0) target = $region41
  $region40: #{decoder1d_forward.1} parent=0 // pred_region
    _
  $region41: #{decoder1d_forward.1} parent=0 // pred_fallthru
    _
  // Predicated region
  $region42: #{decoder1d_forward.1} parent=0 // pred_check
    _
  $region43: #{decoder1d_forward.1} parent=0 // pred_check_branch
    %49 = sbr.rel (0) target = $region45
  $region44: #{decoder1d_forward.1} parent=0 // pred_region
    _
  $region45: #{decoder1d_forward.1} parent=0 // pred_fallthru
    _
  // Predicated region
  $region46: #{decoder1d_forward.1} parent=0 // pred_check
    _
  $region47: #{decoder1d_forward.1} parent=0 // pred_check_branch
    %51 = sbr.rel (0) target = $region49
  $region48: #{decoder1d_forward.1} parent=0 // pred_region
    _
  $region49: #{decoder1d_forward.1} parent=0 // pred_fallthru
    _
  // Predicated region
  $region50: #{decoder1d_forward.1} parent=0 // pred_check
    _
  $region51: #{decoder1d_forward.1} parent=0 // pred_check_branch
    %53 = sbr.rel (0) target = $region53
  $region52: #{decoder1d_forward.1} parent=0 // pred_region
    _
  $region53: #{decoder1d_forward.1} parent=0 // pred_fallthru
    _
  // Predicated region
  $region54: #{decoder1d_forward.1} parent=0 // pred_check
    _
  $region55: #{decoder1d_forward.1} parent=0 // pred_check_branch
    %55 = sbr.rel (0) target = $region57
  $region56: #{decoder1d_forward.1} parent=0 // pred_region
    _
  $region57: #{decoder1d_forward.1} parent=0 // pred_fallthru
    _
  // Predicated region
  $region58: #{decoder1d_forward.1} parent=0 // pred_check
    _
  $region59: #{decoder1d_forward.1} parent=0 // pred_check_branch
    %57 = sbr.rel (0) target = $region61
  $region60: #{decoder1d_forward.1} parent=0 // pred_region
    _
  $region61: #{decoder1d_forward.1} parent=0 // pred_fallthru
    _
  // Predicated region
  $region62: #{decoder1d_forward.1} parent=0 // pred_check
    _
  $region63: #{decoder1d_forward.1} parent=0 // pred_check_branch
    %59 = sbr.rel (0) target = $region65
  $region64: #{decoder1d_forward.1} parent=0 // pred_region
    _
  $region65: #{decoder1d_forward.1} parent=0 // pred_fallthru
    _
  // Predicated region
  $region66: #{decoder1d_forward.1} parent=0 // pred_check
    _
  $region67: #{decoder1d_forward.1} parent=0 // pred_check_branch
    %61 = sbr.rel (0) target = $region69
  $region68: #{decoder1d_forward.1} parent=0 // pred_region
    _
  $region69: #{decoder1d_forward.1} parent=0 // pred_fallthru
    _
  // Predicated region
  $region70: #{decoder1d_forward.1} parent=0 // pred_check
    _
  $region71: #{decoder1d_forward.1} parent=0 // pred_check_branch
    %63 = sbr.rel (0) target = $region73
  $region72: #{decoder1d_forward.1} parent=0 // pred_region
    _
  $region73: #{decoder1d_forward.1} parent=0 // pred_fallthru
    _
  // Predicated region
  $region74: #{decoder1d_forward.1} parent=0 // pred_check
    _
  $region75: #{decoder1d_forward.1} parent=0 // pred_check_branch
    %65 = sbr.rel (0) target = $region77
  $region76: #{decoder1d_forward.1} parent=0 // pred_region
    _
  $region77: #{decoder1d_forward.1} parent=0 // pred_fallthru
    _
  // Predicated region
  $region78: #{decoder1d_forward.1} parent=0 // pred_check
    _
  $region79: #{decoder1d_forward.1} parent=0 // pred_check_branch
    %67 = sbr.rel (0) target = $region81
  $region80: #{decoder1d_forward.1} parent=0 // pred_region
    _
  $region81: #{decoder1d_forward.1} parent=0 // pred_fallthru
    _
  // Predicated region
  $region82: #{decoder1d_forward.1} parent=0 // pred_check
    _
  $region83: #{decoder1d_forward.1} parent=0 // pred_check_branch
    %69 = sbr.rel (0) target = $region85
  $region84: #{decoder1d_forward.1} parent=0 // pred_region
    _
  $region85: #{decoder1d_forward.1} parent=0 // pred_fallthru
    _
  // Predicated region
  $region86: #{decoder1d_forward.1} parent=0 // pred_check
    _
  $region87: #{decoder1d_forward.1} parent=0 // pred_check_branch
    %71 = sbr.rel (0) target = $region89
  $region88: #{decoder1d_forward.1} parent=0 // pred_region
    _
  $region89: #{decoder1d_forward.1} parent=0 // pred_fallthru
    _
  // Predicated region
  $region90: #{decoder1d_forward.1} parent=0 // pred_check
    _
  $region91: #{decoder1d_forward.1} parent=0 // pred_check_branch
    %73 = sbr.rel (0) target = $region93
  $region92: #{decoder1d_forward.1} parent=0 // pred_region
    _
  $region93: #{decoder1d_forward.1} parent=0 // pred_fallthru
    _
  %v74 = vld [vmem:[%s0] sm:$0x3]
  %v75 = vld [vmem:[%s3] sm:$0xff]
  %v76 = vld [vmem:[%s3 + $0x8] sm:$0xff]
  %v77 = vld [vmem:[%s4] sm:$0x1]
  %v79 = vlaneseq
  %v80 = vshrl.u32 %v79, 7
  %v81 = vsub.s32 0, %v80
  %v82 = vrot.slane %v77, %v81
  %vm84 = vcmask 130048
  %v86 = vsel %vm84, %v74, 0
  %88 = vmatprep.subr.mxu0 0.0
  %89 = vmatpush1.msra.mxu0 %v75
  %90 = vmatprep.subr.mxu0 0.0
  %91 = vmatpush1.msra.mxu0 %v76
  %92 = vmatprep.subr.mxu0 0.0
  %93 = vmatpush1.msra.mxu0 0.0
  %94 = vmatprep.subr.mxu0 0.0
  %95 = vmatpush1.msra.mxu0 0.0
  %96 = vmatprep.subr.mxu0 0.0
  %97 = vmatpush1.msra.mxu0 0.0
  %98 = vmatprep.subr.mxu0 0.0
  %99 = vmatpush1.msra.mxu0 0.0
  %100 = vmatprep.subr.mxu0 0.0
  %101 = vmatpush1.msra.mxu0 0.0
  %102 = vmatprep.subr.mxu0 0.0
  %103 = vmatpush1.msra.mxu0 0.0
  %104 = vmatprep.subr.mxu0 0.0
  %105 = vmatpush1.msra.mxu0 0.0
  %106 = vmatprep.subr.mxu0 0.0
  %107 = vmatpush1.msra.mxu0 0.0
  %108 = vmatprep.subr.mxu0 0.0
  %109 = vmatpush1.msra.mxu0 0.0
  %110 = vmatprep.subr.mxu0 0.0
  %111 = vmatpush1.msra.mxu0 0.0
  %112 = vmatprep.subr.mxu0 0.0
  %113 = vmatpush1.msra.mxu0 0.0
  %114 = vmatprep.subr.mxu0 0.0
  %115 = vmatpush1.msra.mxu0 0.0
  %116 = vmatprep.subr.mxu0 0.0
  %117 = vmatpush1.msra.mxu0 0.0
  %118 = vmatprep.subr.mxu0 0.0
  %119 = vmatpush1.msra.mxu0 0.0
  %120 = vmatprep.subr.mxu0 0.0
  %121 = vmatpush1.msra.mxu0 0.0
  %122 = vmatprep.subr.mxu0 0.0
  %123 = vmatpush1.msra.mxu0 0.0
  %124 = vmatprep.subr.mxu0 0.0
  %125 = vmatpush1.msra.mxu0 0.0
  %126 = vmatprep.subr.mxu0 0.0
  %127 = vmatpush1.msra.mxu0 0.0
  %128 = vmatprep.subr.mxu0 0.0
  %129 = vmatpush1.msra.mxu0 0.0
  %130 = vmatprep.subr.mxu0 0.0
  %131 = vmatpush1.msra.mxu0 0.0
  %132 = vmatprep.subr.mxu0 0.0
  %133 = vmatpush1.msra.mxu0 0.0
  %134 = vmatprep.subr.mxu0 0.0
  %135 = vmatpush1.msra.mxu0 0.0
  %136 = vmatprep.subr.mxu0 0.0
  %137 = vmatpush1.msra.mxu0 0.0
  %138 = vmatprep.subr.mxu0 0.0
  %139 = vmatpush1.msra.mxu0 0.0
  %140 = vmatprep.subr.mxu0 0.0
  %141 = vmatpush1.msra.mxu0 0.0
  %142 = vmatprep.subr.mxu0 0.0
  %143 = vmatpush1.msra.mxu0 0.0
  %144 = vmatprep.subr.mxu0 0.0
  %145 = vmatpush1.msra.mxu0 0.0
  %146 = vmatprep.subr.mxu0 0.0
  %147 = vmatpush1.msra.mxu0 0.0
  %148 = vmatprep.subr.mxu0 0.0
  %149 = vmatpush1.msra.mxu0 0.0
  %150 = vmatprep.subr.mxu0 0.0
  %151 = vmatpush1.msra.mxu0 0.0
  %152 = vmatprep.mubr.f32.mxu0 0.0
  %153 = vmatmul.mubr.f32.gmra.mrb[0].mxu0 %v86
  %v154 = vpop.f32.mrb[0].mxu0
  %v155 = vadd.f32 %v82, %v154
  %v156 = vpop.f32.mrb[0].mxu0
  %157 = vdwg.mxu0
  %v158 = vmax.f32 %v155, 0.0
  %v159 = vld [vmem:[%s5] sm:$0xff]
  %v160 = vld [vmem:[%s5 + $0x8] sm:$0xff]
  %v161 = vld [vmem:[%s5 + $0x10] sm:$0xff]
  %v162 = vld [vmem:[%s5 + $0x18] sm:$0xff]
  %v163 = vld [vmem:[%s6] sm:$0x1]
  %v165 = vlaneseq
  %v166 = vshrl.u32 %v165, 7
  %v167 = vsub.s32 0, %v166
  %v168 = vrot.slane %v163, %v167
  %vm170 = vcmask 261120
  %v172 = vsel %vm170, %v158, 0
  %174 = vmatprep.subr.mxu0 0.0
  %175 = vmatpush1.msra.mxu0 %v159
  %176 = vmatprep.subr.mxu0 0.0
  %177 = vmatpush1.msra.mxu0 %v160
  %178 = vmatprep.subr.mxu0 0.0
  %179 = vmatpush1.msra.mxu0 %v161
  %180 = vmatprep.subr.mxu0 0.0
  %181 = vmatpush1.msra.mxu0 %v162
  %182 = vmatprep.subr.mxu0 0.0
  %183 = vmatpush1.msra.mxu0 0.0
  %184 = vmatprep.subr.mxu0 0.0
  %185 = vmatpush1.msra.mxu0 0.0
  %186 = vmatprep.subr.mxu0 0.0
  %187 = vmatpush1.msra.mxu0 0.0
  %188 = vmatprep.subr.mxu0 0.0
  %189 = vmatpush1.msra.mxu0 0.0
  %190 = vmatprep.subr.mxu0 0.0
  %191 = vmatpush1.msra.mxu0 0.0
  %192 = vmatprep.subr.mxu0 0.0
  %193 = vmatpush1.msra.mxu0 0.0
  %194 = vmatprep.subr.mxu0 0.0
  %195 = vmatpush1.msra.mxu0 0.0
  %196 = vmatprep.subr.mxu0 0.0
  %197 = vmatpush1.msra.mxu0 0.0
  %198 = vmatprep.subr.mxu0 0.0
  %199 = vmatpush1.msra.mxu0 0.0
  %200 = vmatprep.subr.mxu0 0.0
  %201 = vmatpush1.msra.mxu0 0.0
  %202 = vmatprep.subr.mxu0 0.0
  %203 = vmatpush1.msra.mxu0 0.0
  %204 = vmatprep.subr.mxu0 0.0
  %205 = vmatpush1.msra.mxu0 0.0
  %206 = vmatprep.subr.mxu0 0.0
  %207 = vmatpush1.msra.mxu0 0.0
  %208 = vmatprep.subr.mxu0 0.0
  %209 = vmatpush1.msra.mxu0 0.0
  %210 = vmatprep.subr.mxu0 0.0
  %211 = vmatpush1.msra.mxu0 0.0
  %212 = vmatprep.subr.mxu0 0.0
  %213 = vmatpush1.msra.mxu0 0.0
  %214 = vmatprep.subr.mxu0 0.0
  %215 = vmatpush1.msra.mxu0 0.0
  %216 = vmatprep.subr.mxu0 0.0
  %217 = vmatpush1.msra.mxu0 0.0
  %218 = vmatprep.subr.mxu0 0.0
  %219 = vmatpush1.msra.mxu0 0.0
  %220 = vmatprep.subr.mxu0 0.0
  %221 = vmatpush1.msra.mxu0 0.0
  %222 = vmatprep.subr.mxu0 0.0
  %223 = vmatpush1.msra.mxu0 0.0
  %224 = vmatprep.subr.mxu0 0.0
  %225 = vmatpush1.msra.mxu0 0.0
  %226 = vmatprep.subr.mxu0 0.0
  %227 = vmatpush1.msra.mxu0 0.0
  %228 = vmatprep.subr.mxu0 0.0
  %229 = vmatpush1.msra.mxu0 0.0
  %230 = vmatprep.subr.mxu0 0.0
  %231 = vmatpush1.msra.mxu0 0.0
  %232 = vmatprep.subr.mxu0 0.0
  %233 = vmatpush1.msra.mxu0 0.0
  %234 = vmatprep.subr.mxu0 0.0
  %235 = vmatpush1.msra.mxu0 0.0
  %236 = vmatprep.subr.mxu0 0.0
  %237 = vmatpush1.msra.mxu0 0.0
  %238 = vmatprep.mubr.f32.mxu0 0.0
  %239 = vmatmul.mubr.f32.gmra.mrb[0].mxu0 %v172
  %v240 = vpop.f32.mrb[0].mxu0
  %v241 = vadd.f32 %v168, %v240
  %v242 = vpop.f32.mrb[0].mxu0
  %243 = vdwg.mxu0
  %v244 = vmax.f32 %v241, 0.0
  %v245 = vld [vmem:[%s7] sm:$0xff]
  %v246 = vld [vmem:[%s7 + $0x8] sm:$0xff]
  %v247 = vld [vmem:[%s7 + $0x10] sm:$0xff]
  %v248 = vld [vmem:[%s7 + $0x18] sm:$0xff]
  %v249 = vld [vmem:[%s8] sm:$0x1]
  %v251 = vlaneseq
  %v252 = vshrl.u32 %v251, 7
  %v253 = vsub.s32 0, %v252
  %v254 = vrot.slane %v249, %v253
  %v257 = vsel %vm170, %v244, 0
  %259 = vmatprep.subr.mxu0 0.0
  %260 = vmatpush1.msra.mxu0 %v245
  %261 = vmatprep.subr.mxu0 0.0
  %262 = vmatpush1.msra.mxu0 %v246
  %263 = vmatprep.subr.mxu0 0.0
  %264 = vmatpush1.msra.mxu0 %v247
  %265 = vmatprep.subr.mxu0 0.0
  %266 = vmatpush1.msra.mxu0 %v248
  %267 = vmatprep.subr.mxu0 0.0
  %268 = vmatpush1.msra.mxu0 0.0
  %269 = vmatprep.subr.mxu0 0.0
  %270 = vmatpush1.msra.mxu0 0.0
  %271 = vmatprep.subr.mxu0 0.0
  %272 = vmatpush1.msra.mxu0 0.0
  %273 = vmatprep.subr.mxu0 0.0
  %274 = vmatpush1.msra.mxu0 0.0
  %275 = vmatprep.subr.mxu0 0.0
  %276 = vmatpush1.msra.mxu0 0.0
  %277 = vmatprep.subr.mxu0 0.0
  %278 = vmatpush1.msra.mxu0 0.0
  %279 = vmatprep.subr.mxu0 0.0
  %280 = vmatpush1.msra.mxu0 0.0
  %281 = vmatprep.subr.mxu0 0.0
  %282 = vmatpush1.msra.mxu0 0.0
  %283 = vmatprep.subr.mxu0 0.0
  %284 = vmatpush1.msra.mxu0 0.0
  %285 = vmatprep.subr.mxu0 0.0
  %286 = vmatpush1.msra.mxu0 0.0
  %287 = vmatprep.subr.mxu0 0.0
  %288 = vmatpush1.msra.mxu0 0.0
  %289 = vmatprep.subr.mxu0 0.0
  %290 = vmatpush1.msra.mxu0 0.0
  %291 = vmatprep.subr.mxu0 0.0
  %292 = vmatpush1.msra.mxu0 0.0
  %293 = vmatprep.subr.mxu0 0.0
  %294 = vmatpush1.msra.mxu0 0.0
  %295 = vmatprep.subr.mxu0 0.0
  %296 = vmatpush1.msra.mxu0 0.0
  %297 = vmatprep.subr.mxu0 0.0
  %298 = vmatpush1.msra.mxu0 0.0
  %299 = vmatprep.subr.mxu0 0.0
  %300 = vmatpush1.msra.mxu0 0.0
  %301 = vmatprep.subr.mxu0 0.0
  %302 = vmatpush1.msra.mxu0 0.0
  %303 = vmatprep.subr.mxu0 0.0
  %304 = vmatpush1.msra.mxu0 0.0
  %305 = vmatprep.subr.mxu0 0.0
  %306 = vmatpush1.msra.mxu0 0.0
  %307 = vmatprep.subr.mxu0 0.0
  %308 = vmatpush1.msra.mxu0 0.0
  %309 = vmatprep.subr.mxu0 0.0
  %310 = vmatpush1.msra.mxu0 0.0
  %311 = vmatprep.subr.mxu0 0.0
  %312 = vmatpush1.msra.mxu0 0.0
  %313 = vmatprep.subr.mxu0 0.0
  %314 = vmatpush1.msra.mxu0 0.0
  %315 = vmatprep.subr.mxu0 0.0
  %316 = vmatpush1.msra.mxu0 0.0
  %317 = vmatprep.subr.mxu0 0.0
  %318 = vmatpush1.msra.mxu0 0.0
  %319 = vmatprep.subr.mxu0 0.0
  %320 = vmatpush1.msra.mxu0 0.0
  %321 = vmatprep.subr.mxu0 0.0
  %322 = vmatpush1.msra.mxu0 0.0
  %323 = vmatprep.mubr.f32.mxu0 0.0
  %324 = vmatmul.mubr.f32.gmra.mrb[0].mxu0 %v257
  %v325 = vpop.f32.mrb[0].mxu0
  %v326 = vadd.f32 %v254, %v325
  %v327 = vpop.f32.mrb[0].mxu0
  %328 = vdwg.mxu0
  %v329 = vmax.f32 %v326, 0.0
  %v330 = vld [vmem:[%s9] sm:$0xff]
  %v331 = vld [vmem:[%s9 + $0x8] sm:$0xff]
  %v332 = vld [vmem:[%s9 + $0x10] sm:$0xff]
  %v333 = vld [vmem:[%s9 + $0x18] sm:$0xff]
  %v334 = vld [vmem:[%s10] sm:$0x1]
  %v336 = vlaneseq
  %v337 = vshrl.u32 %v336, 7
  %v338 = vsub.s32 0, %v337
  %v339 = vrot.slane %v334, %v338
  %v342 = vsel %vm170, %v329, 0
  %344 = vmatprep.subr.mxu0 0.0
  %345 = vmatpush1.msra.mxu0 %v330
  %346 = vmatprep.subr.mxu0 0.0
  %347 = vmatpush1.msra.mxu0 %v331
  %348 = vmatprep.subr.mxu0 0.0
  %349 = vmatpush1.msra.mxu0 %v332
  %350 = vmatprep.subr.mxu0 0.0
  %351 = vmatpush1.msra.mxu0 %v333
  %352 = vmatprep.subr.mxu0 0.0
  %353 = vmatpush1.msra.mxu0 0.0
  %354 = vmatprep.subr.mxu0 0.0
  %355 = vmatpush1.msra.mxu0 0.0
  %356 = vmatprep.subr.mxu0 0.0
  %357 = vmatpush1.msra.mxu0 0.0
  %358 = vmatprep.subr.mxu0 0.0
  %359 = vmatpush1.msra.mxu0 0.0
  %360 = vmatprep.subr.mxu0 0.0
  %361 = vmatpush1.msra.mxu0 0.0
  %362 = vmatprep.subr.mxu0 0.0
  %363 = vmatpush1.msra.mxu0 0.0
  %364 = vmatprep.subr.mxu0 0.0
  %365 = vmatpush1.msra.mxu0 0.0
  %366 = vmatprep.subr.mxu0 0.0
  %367 = vmatpush1.msra.mxu0 0.0
  %368 = vmatprep.subr.mxu0 0.0
  %369 = vmatpush1.msra.mxu0 0.0
  %370 = vmatprep.subr.mxu0 0.0
  %371 = vmatpush1.msra.mxu0 0.0
  %372 = vmatprep.subr.mxu0 0.0
  %373 = vmatpush1.msra.mxu0 0.0
  %374 = vmatprep.subr.mxu0 0.0
  %375 = vmatpush1.msra.mxu0 0.0
  %376 = vmatprep.subr.mxu0 0.0
  %377 = vmatpush1.msra.mxu0 0.0
  %378 = vmatprep.subr.mxu0 0.0
  %379 = vmatpush1.msra.mxu0 0.0
  %380 = vmatprep.subr.mxu0 0.0
  %381 = vmatpush1.msra.mxu0 0.0
  %382 = vmatprep.subr.mxu0 0.0
  %383 = vmatpush1.msra.mxu0 0.0
  %384 = vmatprep.subr.mxu0 0.0
  %385 = vmatpush1.msra.mxu0 0.0
  %386 = vmatprep.subr.mxu0 0.0
  %387 = vmatpush1.msra.mxu0 0.0
  %388 = vmatprep.subr.mxu0 0.0
  %389 = vmatpush1.msra.mxu0 0.0
  %390 = vmatprep.subr.mxu0 0.0
  %391 = vmatpush1.msra.mxu0 0.0
  %392 = vmatprep.subr.mxu0 0.0
  %393 = vmatpush1.msra.mxu0 0.0
  %394 = vmatprep.subr.mxu0 0.0
  %395 = vmatpush1.msra.mxu0 0.0
  %396 = vmatprep.subr.mxu0 0.0
  %397 = vmatpush1.msra.mxu0 0.0
  %398 = vmatprep.subr.mxu0 0.0
  %399 = vmatpush1.msra.mxu0 0.0
  %400 = vmatprep.subr.mxu0 0.0
  %401 = vmatpush1.msra.mxu0 0.0
  %402 = vmatprep.subr.mxu0 0.0
  %403 = vmatpush1.msra.mxu0 0.0
  %404 = vmatprep.subr.mxu0 0.0
  %405 = vmatpush1.msra.mxu0 0.0
  %406 = vmatprep.subr.mxu0 0.0
  %407 = vmatpush1.msra.mxu0 0.0
  %408 = vmatprep.mubr.f32.mxu0 0.0
  %409 = vmatmul.mubr.f32.gmra.mrb[0].mxu0 %v342
  %v410 = vpop.f32.mrb[0].mxu0
  %v411 = vadd.f32 %v339, %v410
  %v412 = vpop.f32.mrb[0].mxu0
  %413 = vdwg.mxu0
  %v414 = vld [vmem:[%s11] sm:$0xff]
  %v415 = vld [vmem:[%s11 + $0x8] sm:$0xff]
  %v416 = vld [vmem:[%s11 + $0x10] sm:$0xff]
  %v417 = vld [vmem:[%s11 + $0x18] sm:$0xff]
  %v418 = vld [vmem:[%s11 + $0x20] sm:$0xff]
  %v419 = vld [vmem:[%s11 + $0x28] sm:$0xff]
  %v420 = vld [vmem:[%s11 + $0x30] sm:$0xff]
  %v421 = vld [vmem:[%s11 + $0x38] sm:$0xff]
  %v422 = vld [vmem:[%s11 + $0x40] sm:$0xff]
  %v423 = vld [vmem:[%s11 + $0x48] sm:$0xff]
  %v424 = vld [vmem:[%s11 + $0x50] sm:$0xff]
  %v425 = vld [vmem:[%s11 + $0x58] sm:$0xff]
  %v426 = vld [vmem:[%s11 + $0x60] sm:$0xff]
  %v427 = vld [vmem:[%s11 + $0x68] sm:$0xff]
  %v428 = vld [vmem:[%s11 + $0x70] sm:$0xff]
  %v429 = vld [vmem:[%s11 + $0x78] sm:$0xff]
  %v430 = vld [vmem:[%s12] sm:$0x1]
  %v431 = vld [vmem:[%s13] sm:$0x1]
  %v432 = vld [vmem:[%s14] sm:$0x1]
  %v433 = vld [vmem:[%s15] sm:$0xff]
  %v434 = vld [vmem:[%s15 + $0x8] sm:$0xff]
  %v435 = vld [vmem:[%s15 + $0x10] sm:$0xff]
  %v436 = vld [vmem:[%s15 + $0x18] sm:$0xff]
  %v437 = vld [vmem:[%s15 + $0x20] sm:$0xff]
  %v438 = vld [vmem:[%s15 + $0x28] sm:$0xff]
  %v439 = vld [vmem:[%s15 + $0x30] sm:$0xff]
  %v440 = vld [vmem:[%s15 + $0x38] sm:$0xff]
  %v441 = vld [vmem:[%s15 + $0x40] sm:$0xff]
  %v442 = vld [vmem:[%s15 + $0x48] sm:$0xff]
  %v443 = vld [vmem:[%s15 + $0x50] sm:$0xff]
  %v444 = vld [vmem:[%s15 + $0x58] sm:$0xff]
  %v445 = vld [vmem:[%s15 + $0x60] sm:$0xff]
  %v446 = vld [vmem:[%s15 + $0x68] sm:$0xff]
  %v447 = vld [vmem:[%s15 + $0x70] sm:$0xff]
  %v448 = vld [vmem:[%s15 + $0x78] sm:$0xff]
  %v449 = vld [vmem:[%s1] sm:$0x3]
  %v450 = vadd.f32 %v411, %v449
  %v452 = vlaneseq
  %v453 = vshrl.u32 %v452, 7
  %v454 = vsub.s32 0, %v453
  %v455 = vrot.slane %v430, %v454
  %457 = vmatprep.subr.mxu0 0.0
  %458 = vmatpush1.msra.mxu0 %v414
  %459 = vmatprep.subr.mxu0 0.0
  %460 = vmatpush1.msra.mxu0 %v415
  %461 = vmatprep.subr.mxu0 0.0
  %462 = vmatpush1.msra.mxu0 %v416
  %463 = vmatprep.subr.mxu0 0.0
  %464 = vmatpush1.msra.mxu0 %v417
  %465 = vmatprep.subr.mxu0 0.0
  %466 = vmatpush1.msra.mxu0 %v418
  %467 = vmatprep.subr.mxu0 0.0
  %468 = vmatpush1.msra.mxu0 %v419
  %469 = vmatprep.subr.mxu0 0.0
  %470 = vmatpush1.msra.mxu0 %v420
  %471 = vmatprep.subr.mxu0 0.0
  %472 = vmatpush1.msra.mxu0 %v421
  %473 = vmatprep.subr.mxu0 0.0
  %474 = vmatpush1.msra.mxu0 %v422
  %475 = vmatprep.subr.mxu0 0.0
  %476 = vmatpush1.msra.mxu0 %v423
  %477 = vmatprep.subr.mxu0 0.0
  %478 = vmatpush1.msra.mxu0 %v424
  %479 = vmatprep.subr.mxu0 0.0
  %480 = vmatpush1.msra.mxu0 %v425
  %481 = vmatprep.subr.mxu0 0.0
  %482 = vmatpush1.msra.mxu0 %v426
  %483 = vmatprep.subr.mxu0 0.0
  %484 = vmatpush1.msra.mxu0 %v427
  %485 = vmatprep.subr.mxu0 0.0
  %486 = vmatpush1.msra.mxu0 %v428
  %487 = vmatprep.subr.mxu0 0.0
  %488 = vmatpush1.msra.mxu0 %v429
  %489 = vmatprep.subr.mxu0 0.0
  %490 = vmatpush1.msra.mxu0 0.0
  %491 = vmatprep.subr.mxu0 0.0
  %492 = vmatpush1.msra.mxu0 0.0
  %493 = vmatprep.subr.mxu0 0.0
  %494 = vmatpush1.msra.mxu0 0.0
  %495 = vmatprep.subr.mxu0 0.0
  %496 = vmatpush1.msra.mxu0 0.0
  %497 = vmatprep.subr.mxu0 0.0
  %498 = vmatpush1.msra.mxu0 0.0
  %499 = vmatprep.subr.mxu0 0.0
  %500 = vmatpush1.msra.mxu0 0.0
  %501 = vmatprep.subr.mxu0 0.0
  %502 = vmatpush1.msra.mxu0 0.0
  %503 = vmatprep.subr.mxu0 0.0
  %504 = vmatpush1.msra.mxu0 0.0
  %505 = vmatprep.subr.mxu0 0.0
  %506 = vmatpush1.msra.mxu0 0.0
  %507 = vmatprep.subr.mxu0 0.0
  %508 = vmatpush1.msra.mxu0 0.0
  %509 = vmatprep.subr.mxu0 0.0
  %510 = vmatpush1.msra.mxu0 0.0
  %511 = vmatprep.subr.mxu0 0.0
  %512 = vmatpush1.msra.mxu0 0.0
  %513 = vmatprep.subr.mxu0 0.0
  %514 = vmatpush1.msra.mxu0 0.0
  %515 = vmatprep.subr.mxu0 0.0
  %516 = vmatpush1.msra.mxu0 0.0
  %517 = vmatprep.subr.mxu0 0.0
  %518 = vmatpush1.msra.mxu0 0.0
  %519 = vmatprep.subr.mxu0 0.0
  %520 = vmatpush1.msra.mxu0 0.0
  %521 = vmatprep.mubr.f32.mxu0 0.0
  %522 = vmatmul.mubr.f32.gmra.mrb[0].mxu0 %v450
  %v523 = vpop.f32.mrb[0].mxu0
  %v524 = vadd.f32 %v455, %v523
  %v525 = vpop.f32.mrb[0].mxu0
  %526 = vdwg.mxu0
  %vm527 = vcmask 1041408
  %v528 = vsel %vm527, %v524, 0.0
  %v529 = vrot.slane %v528, 4
  %v530 = vadd.f32 %v528, %v529
  %v531 = vrot.slane %v530, 2
  %v532 = vadd.f32 %v530, %v531
  %v533 = vrot.slane %v532, 1
  %v534 = vadd.f32 %v532, %v533
  %535 = vmatprep.subr.mxu0 0.0
  %536 = vmatpush1.msra.mxu0 %v433
  %537 = vmatprep.subr.mxu0 0.0
  %538 = vmatpush1.msra.mxu0 %v434
  %539 = vmatprep.subr.mxu0 0.0
  %540 = vmatpush1.msra.mxu0 %v435
  %541 = vmatprep.subr.mxu0 0.0
  %542 = vmatpush1.msra.mxu0 %v436
  %543 = vmatprep.subr.mxu0 0.0
  %544 = vmatpush1.msra.mxu0 %v437
  %545 = vmatprep.subr.mxu0 0.0
  %546 = vmatpush1.msra.mxu0 %v438
  %547 = vmatprep.subr.mxu0 0.0
  %548 = vmatpush1.msra.mxu0 %v439
  %549 = vmatprep.subr.mxu0 0.0
  %550 = vmatpush1.msra.mxu0 %v440
  %551 = vmatprep.subr.mxu0 0.0
  %552 = vmatpush1.msra.mxu0 %v441
  %553 = vmatprep.subr.mxu0 0.0
  %554 = vmatpush1.msra.mxu0 %v442
  %555 = vmatprep.subr.mxu0 0.0
  %556 = vmatpush1.msra.mxu0 %v443
  %557 = vmatprep.subr.mxu0 0.0
  %558 = vmatpush1.msra.mxu0 %v444
  %559 = vmatprep.subr.mxu0 0.0
  %560 = vmatpush1.msra.mxu0 %v445
  %561 = vmatprep.subr.mxu0 0.0
  %562 = vmatpush1.msra.mxu0 %v446
  %563 = vmatprep.subr.mxu0 0.0
  %564 = vmatpush1.msra.mxu0 %v447
  %565 = vmatprep.subr.mxu0 0.0
  %566 = vmatpush1.msra.mxu0 %v448
  %567 = vmatprep.subr.mxu0 0.0
  %568 = vmatpush1.msra.mxu0 0.0
  %569 = vmatprep.subr.mxu0 0.0
  %570 = vmatpush1.msra.mxu0 0.0
  %571 = vmatprep.subr.mxu0 0.0
  %572 = vmatpush1.msra.mxu0 0.0
  %573 = vmatprep.subr.mxu0 0.0
  %574 = vmatpush1.msra.mxu0 0.0
  %575 = vmatprep.subr.mxu0 0.0
  %576 = vmatpush1.msra.mxu0 0.0
  %577 = vmatprep.subr.mxu0 0.0
  %578 = vmatpush1.msra.mxu0 0.0
  %579 = vmatprep.subr.mxu0 0.0
  %580 = vmatpush1.msra.mxu0 0.0
  %581 = vmatprep.subr.mxu0 0.0
  %582 = vmatpush1.msra.mxu0 0.0
  %583 = vmatprep.subr.mxu0 0.0
  %584 = vmatpush1.msra.mxu0 0.0
  %585 = vmatprep.subr.mxu0 0.0
  %586 = vmatpush1.msra.mxu0 0.0
  %587 = vmatprep.subr.mxu0 0.0
  %588 = vmatpush1.msra.mxu0 0.0
  %589 = vmatprep.subr.mxu0 0.0
  %590 = vmatpush1.msra.mxu0 0.0
  %591 = vmatprep.subr.mxu0 0.0
  %592 = vmatpush1.msra.mxu0 0.0
  %593 = vmatprep.subr.mxu0 0.0
  %594 = vmatpush1.msra.mxu0 0.0
  %595 = vmatprep.subr.mxu0 0.0
  %596 = vmatpush1.msra.mxu0 0.0
  %597 = vmatprep.subr.mxu0 0.0
  %598 = vmatpush1.msra.mxu0 0.0
  %599 = vmatprep.mubr.f32.mxu0 0.0
  %600 = vmatmul.mubr.f32.gmra.mrb[0].mxu0 %v534
  %v601 = vpop.f32.mrb[0].mxu0
  %v602 = vadd.f32 0.0, %v601
  %v603 = vpop.f32.mrb[0].mxu0
  %604 = vdwg.mxu0
  %v605 = vlaneseq
  %v606 = vshrl.u32 %v605, 7
  %v607 = vsub.s32 0, %v606
  %v608 = vrot.slane %v602, %v607
  %v609 = vsub.f32 %v524, %v608
  %v610 = vmul.f32 %v609, %v609
  %v611 = vsel %vm527, %v610, 0.0
  %v612 = vrot.slane %v611, 4
  %v613 = vadd.f32 %v611, %v612
  %v614 = vrot.slane %v613, 2
  %v615 = vadd.f32 %v613, %v614
  %v616 = vrot.slane %v615, 1
  %v617 = vadd.f32 %v615, %v616
  %618 = vmatprep.subr.mxu0 0.0
  %619 = vmatpush1.msra.mxu0 %v433
  %620 = vmatprep.subr.mxu0 0.0
  %621 = vmatpush1.msra.mxu0 %v434
  %622 = vmatprep.subr.mxu0 0.0
  %623 = vmatpush1.msra.mxu0 %v435
  %624 = vmatprep.subr.mxu0 0.0
  %625 = vmatpush1.msra.mxu0 %v436
  %626 = vmatprep.subr.mxu0 0.0
  %627 = vmatpush1.msra.mxu0 %v437
  %628 = vmatprep.subr.mxu0 0.0
  %629 = vmatpush1.msra.mxu0 %v438
  %630 = vmatprep.subr.mxu0 0.0
  %631 = vmatpush1.msra.mxu0 %v439
  %632 = vmatprep.subr.mxu0 0.0
  %633 = vmatpush1.msra.mxu0 %v440
  %634 = vmatprep.subr.mxu0 0.0
  %635 = vmatpush1.msra.mxu0 %v441
  %636 = vmatprep.subr.mxu0 0.0
  %637 = vmatpush1.msra.mxu0 %v442
  %638 = vmatprep.subr.mxu0 0.0
  %639 = vmatpush1.msra.mxu0 %v443
  %640 = vmatprep.subr.mxu0 0.0
  %641 = vmatpush1.msra.mxu0 %v444
  %642 = vmatprep.subr.mxu0 0.0
  %643 = vmatpush1.msra.mxu0 %v445
  %644 = vmatprep.subr.mxu0 0.0
  %645 = vmatpush1.msra.mxu0 %v446
  %646 = vmatprep.subr.mxu0 0.0
  %647 = vmatpush1.msra.mxu0 %v447
  %648 = vmatprep.subr.mxu0 0.0
  %649 = vmatpush1.msra.mxu0 %v448
  %650 = vmatprep.subr.mxu0 0.0
  %651 = vmatpush1.msra.mxu0 0.0
  %652 = vmatprep.subr.mxu0 0.0
  %653 = vmatpush1.msra.mxu0 0.0
  %654 = vmatprep.subr.mxu0 0.0
  %655 = vmatpush1.msra.mxu0 0.0
  %656 = vmatprep.subr.mxu0 0.0
  %657 = vmatpush1.msra.mxu0 0.0
  %658 = vmatprep.subr.mxu0 0.0
  %659 = vmatpush1.msra.mxu0 0.0
  %660 = vmatprep.subr.mxu0 0.0
  %661 = vmatpush1.msra.mxu0 0.0
  %662 = vmatprep.subr.mxu0 0.0
  %663 = vmatpush1.msra.mxu0 0.0
  %664 = vmatprep.subr.mxu0 0.0
  %665 = vmatpush1.msra.mxu0 0.0
  %666 = vmatprep.subr.mxu0 0.0
  %667 = vmatpush1.msra.mxu0 0.0
  %668 = vmatprep.subr.mxu0 0.0
  %669 = vmatpush1.msra.mxu0 0.0
  %670 = vmatprep.subr.mxu0 0.0
  %671 = vmatpush1.msra.mxu0 0.0
  %672 = vmatprep.subr.mxu0 0.0
  %673 = vmatpush1.msra.mxu0 0.0
  %674 = vmatprep.subr.mxu0 0.0
  %675 = vmatpush1.msra.mxu0 0.0
  %676 = vmatprep.subr.mxu0 0.0
  %677 = vmatpush1.msra.mxu0 0.0
  %678 = vmatprep.subr.mxu0 0.0
  %679 = vmatpush1.msra.mxu0 0.0
  %680 = vmatprep.subr.mxu0 0.0
  %681 = vmatpush1.msra.mxu0 0.0
  %682 = vmatprep.mubr.f32.mxu0 0.0
  %683 = vmatmul.mubr.f32.gmra.mrb[0].mxu0 %v617
  %v684 = vpop.f32.mrb[0].mxu0
  %v685 = vadd.f32 1e-05, %v684
  %v686 = vpop.f32.mrb[0].mxu0
  %687 = vdwg.mxu0
  %v688 = vrsqrt.pop %v685
  %v689 = vlaneseq
  %v690 = vshrl.u32 %v689, 7
  %v691 = vsub.s32 0, %v690
  %v692 = vrot.slane %v688, %v691
  %v693 = vmul.f32 %v609, %v692
  %v695 = vlaneseq
  %v696 = vshrl.u32 %v695, 7
  %v697 = vsub.s32 0, %v696
  %v698 = vrot.slane %v431, %v697
  %v700 = vmul.f32 %v693, %v698
  %v702 = vlaneseq
  %v703 = vshrl.u32 %v702, 7
  %v704 = vsub.s32 0, %v703
  %v705 = vrot.slane %v432, %v704
  %v707 = vadd.f32 %v700, %v705
  %v708 = vmax.f32 %v707, 0.0
  %v709 = vld [vmem:[%s16] sm:$0xff]
  %v710 = vld [vmem:[%s16 + $0x8] sm:$0xff]
  %v711 = vld [vmem:[%s16 + $0x10] sm:$0xff]
  %v712 = vld [vmem:[%s16 + $0x18] sm:$0xff]
  %v713 = vld [vmem:[%s16 + $0x20] sm:$0xff]
  %v714 = vld [vmem:[%s16 + $0x28] sm:$0xff]
  %v715 = vld [vmem:[%s16 + $0x30] sm:$0xff]
  %v716 = vld [vmem:[%s16 + $0x38] sm:$0xff]
  %v717 = vld [vmem:[%s16 + $0x40] sm:$0xff]
  %v718 = vld [vmem:[%s16 + $0x48] sm:$0xff]
  %v719 = vld [vmem:[%s16 + $0x50] sm:$0xff]
  %v720 = vld [vmem:[%s16 + $0x58] sm:$0xff]
  %v721 = vld [vmem:[%s16 + $0x60] sm:$0xff]
  %v722 = vld [vmem:[%s16 + $0x68] sm:$0xff]
  %v723 = vld [vmem:[%s16 + $0x70] sm:$0xff]
  %v724 = vld [vmem:[%s16 + $0x78] sm:$0xff]
  %v725 = vld [vmem:[%s17] sm:$0x1]
  %v726 = vld [vmem:[%s18] sm:$0x1]
  %v727 = vld [vmem:[%s19] sm:$0x1]
  %v728 = vld [vmem:[%s20] sm:$0xff]
  %v729 = vld [vmem:[%s20 + $0x8] sm:$0xff]
  %v730 = vld [vmem:[%s20 + $0x10] sm:$0xff]
  %v731 = vld [vmem:[%s20 + $0x18] sm:$0xff]
  %v732 = vld [vmem:[%s20 + $0x20] sm:$0xff]
  %v733 = vld [vmem:[%s20 + $0x28] sm:$0xff]
  %v734 = vld [vmem:[%s20 + $0x30] sm:$0xff]
  %v735 = vld [vmem:[%s20 + $0x38] sm:$0xff]
  %v736 = vld [vmem:[%s20 + $0x40] sm:$0xff]
  %v737 = vld [vmem:[%s20 + $0x48] sm:$0xff]
  %v738 = vld [vmem:[%s20 + $0x50] sm:$0xff]
  %v739 = vld [vmem:[%s20 + $0x58] sm:$0xff]
  %v740 = vld [vmem:[%s20 + $0x60] sm:$0xff]
  %v741 = vld [vmem:[%s20 + $0x68] sm:$0xff]
  %v742 = vld [vmem:[%s20 + $0x70] sm:$0xff]
  %v743 = vld [vmem:[%s20 + $0x78] sm:$0xff]
  %v744 = vld [vmem:[%s2] sm:$0x3]
  %v745 = vadd.f32 %v708, %v744
  %v747 = vlaneseq
  %v748 = vshrl.u32 %v747, 7
  %v749 = vsub.s32 0, %v748
  %v750 = vrot.slane %v725, %v749
  %752 = vmatprep.subr.mxu0 0.0
  %753 = vmatpush1.msra.mxu0 %v709
  %754 = vmatprep.subr.mxu0 0.0
  %755 = vmatpush1.msra.mxu0 %v710
  %756 = vmatprep.subr.mxu0 0.0
  %757 = vmatpush1.msra.mxu0 %v711
  %758 = vmatprep.subr.mxu0 0.0
  %759 = vmatpush1.msra.mxu0 %v712
  %760 = vmatprep.subr.mxu0 0.0
  %761 = vmatpush1.msra.mxu0 %v713
  %762 = vmatprep.subr.mxu0 0.0
  %763 = vmatpush1.msra.mxu0 %v714
  %764 = vmatprep.subr.mxu0 0.0
  %765 = vmatpush1.msra.mxu0 %v715
  %766 = vmatprep.subr.mxu0 0.0
  %767 = vmatpush1.msra.mxu0 %v716
  %768 = vmatprep.subr.mxu0 0.0
  %769 = vmatpush1.msra.mxu0 %v717
  %770 = vmatprep.subr.mxu0 0.0
  %771 = vmatpush1.msra.mxu0 %v718
  %772 = vmatprep.subr.mxu0 0.0
  %773 = vmatpush1.msra.mxu0 %v719
  %774 = vmatprep.subr.mxu0 0.0
  %775 = vmatpush1.msra.mxu0 %v720
  %776 = vmatprep.subr.mxu0 0.0
  %777 = vmatpush1.msra.mxu0 %v721
  %778 = vmatprep.subr.mxu0 0.0
  %779 = vmatpush1.msra.mxu0 %v722
  %780 = vmatprep.subr.mxu0 0.0
  %781 = vmatpush1.msra.mxu0 %v723
  %782 = vmatprep.subr.mxu0 0.0
  %783 = vmatpush1.msra.mxu0 %v724
  %784 = vmatprep.subr.mxu0 0.0
  %785 = vmatpush1.msra.mxu0 0.0
  %786 = vmatprep.subr.mxu0 0.0
  %787 = vmatpush1.msra.mxu0 0.0
  %788 = vmatprep.subr.mxu0 0.0
  %789 = vmatpush1.msra.mxu0 0.0
  %790 = vmatprep.subr.mxu0 0.0
  %791 = vmatpush1.msra.mxu0 0.0
  %792 = vmatprep.subr.mxu0 0.0
  %793 = vmatpush1.msra.mxu0 0.0
  %794 = vmatprep.subr.mxu0 0.0
  %795 = vmatpush1.msra.mxu0 0.0
  %796 = vmatprep.subr.mxu0 0.0
  %797 = vmatpush1.msra.mxu0 0.0
  %798 = vmatprep.subr.mxu0 0.0
  %799 = vmatpush1.msra.mxu0 0.0
  %800 = vmatprep.subr.mxu0 0.0
  %801 = vmatpush1.msra.mxu0 0.0
  %802 = vmatprep.subr.mxu0 0.0
  %803 = vmatpush1.msra.mxu0 0.0
  %804 = vmatprep.subr.mxu0 0.0
  %805 = vmatpush1.msra.mxu0 0.0
  %806 = vmatprep.subr.mxu0 0.0
  %807 = vmatpush1.msra.mxu0 0.0
  %808 = vmatprep.subr.mxu0 0.0
  %809 = vmatpush1.msra.mxu0 0.0
  %810 = vmatprep.subr.mxu0 0.0
  %811 = vmatpush1.msra.mxu0 0.0
  %812 = vmatprep.subr.mxu0 0.0
  %813 = vmatpush1.msra.mxu0 0.0
  %814 = vmatprep.subr.mxu0 0.0
  %815 = vmatpush1.msra.mxu0 0.0
  %816 = vmatprep.mubr.f32.mxu0 0.0
  %817 = vmatmul.mubr.f32.gmra.mrb[0].mxu0 %v745
  %v818 = vpop.f32.mrb[0].mxu0
  %v819 = vadd.f32 %v750, %v818
  %v820 = vpop.f32.mrb[0].mxu0
  %821 = vdwg.mxu0
  %v822 = vsel %vm527, %v819, 0.0
  %v823 = vrot.slane %v822, 4
  %v824 = vadd.f32 %v822, %v823
  %v825 = vrot.slane %v824, 2
  %v826 = vadd.f32 %v824, %v825
  %v827 = vrot.slane %v826, 1
  %v828 = vadd.f32 %v826, %v827
  %829 = vmatprep.subr.mxu0 0.0
  %830 = vmatpush1.msra.mxu0 %v728
  %831 = vmatprep.subr.mxu0 0.0
  %832 = vmatpush1.msra.mxu0 %v729
  %833 = vmatprep.subr.mxu0 0.0
  %834 = vmatpush1.msra.mxu0 %v730
  %835 = vmatprep.subr.mxu0 0.0
  %836 = vmatpush1.msra.mxu0 %v731
  %837 = vmatprep.subr.mxu0 0.0
  %838 = vmatpush1.msra.mxu0 %v732
  %839 = vmatprep.subr.mxu0 0.0
  %840 = vmatpush1.msra.mxu0 %v733
  %841 = vmatprep.subr.mxu0 0.0
  %842 = vmatpush1.msra.mxu0 %v734
  %843 = vmatprep.subr.mxu0 0.0
  %844 = vmatpush1.msra.mxu0 %v735
  %845 = vmatprep.subr.mxu0 0.0
  %846 = vmatpush1.msra.mxu0 %v736
  %847 = vmatprep.subr.mxu0 0.0
  %848 = vmatpush1.msra.mxu0 %v737
  %849 = vmatprep.subr.mxu0 0.0
  %850 = vmatpush1.msra.mxu0 %v738
  %851 = vmatprep.subr.mxu0 0.0
  %852 = vmatpush1.msra.mxu0 %v739
  %853 = vmatprep.subr.mxu0 0.0
  %854 = vmatpush1.msra.mxu0 %v740
  %855 = vmatprep.subr.mxu0 0.0
  %856 = vmatpush1.msra.mxu0 %v741
  %857 = vmatprep.subr.mxu0 0.0
  %858 = vmatpush1.msra.mxu0 %v742
  %859 = vmatprep.subr.mxu0 0.0
  %860 = vmatpush1.msra.mxu0 %v743
  %861 = vmatprep.subr.mxu0 0.0
  %862 = vmatpush1.msra.mxu0 0.0
  %863 = vmatprep.subr.mxu0 0.0
  %864 = vmatpush1.msra.mxu0 0.0
  %865 = vmatprep.subr.mxu0 0.0
  %866 = vmatpush1.msra.mxu0 0.0
  %867 = vmatprep.subr.mxu0 0.0
  %868 = vmatpush1.msra.mxu0 0.0
  %869 = vmatprep.subr.mxu0 0.0
  %870 = vmatpush1.msra.mxu0 0.0
  %871 = vmatprep.subr.mxu0 0.0
  %872 = vmatpush1.msra.mxu0 0.0
  %873 = vmatprep.subr.mxu0 0.0
  %874 = vmatpush1.msra.mxu0 0.0
  %875 = vmatprep.subr.mxu0 0.0
  %876 = vmatpush1.msra.mxu0 0.0
  %877 = vmatprep.subr.mxu0 0.0
  %878 = vmatpush1.msra.mxu0 0.0
  %879 = vmatprep.subr.mxu0 0.0
  %880 = vmatpush1.msra.mxu0 0.0
  %881 = vmatprep.subr.mxu0 0.0
  %882 = vmatpush1.msra.mxu0 0.0
  %883 = vmatprep.subr.mxu0 0.0
  %884 = vmatpush1.msra.mxu0 0.0
  %885 = vmatprep.subr.mxu0 0.0
  %886 = vmatpush1.msra.mxu0 0.0
  %887 = vmatprep.subr.mxu0 0.0
  %888 = vmatpush1.msra.mxu0 0.0
  %889 = vmatprep.subr.mxu0 0.0
  %890 = vmatpush1.msra.mxu0 0.0
  %891 = vmatprep.subr.mxu0 0.0
  %892 = vmatpush1.msra.mxu0 0.0
  %893 = vmatprep.mubr.f32.mxu0 0.0
  %894 = vmatmul.mubr.f32.gmra.mrb[0].mxu0 %v828
  %v895 = vpop.f32.mrb[0].mxu0
  %v896 = vadd.f32 0.0, %v895
  %v897 = vpop.f32.mrb[0].mxu0
  %898 = vdwg.mxu0
  %v899 = vlaneseq
  %v900 = vshrl.u32 %v899, 7
  %v901 = vsub.s32 0, %v900
  %v902 = vrot.slane %v896, %v901
  %v903 = vsub.f32 %v819, %v902
  %v904 = vmul.f32 %v903, %v903
  %v905 = vsel %vm527, %v904, 0.0
  %v906 = vrot.slane %v905, 4
  %v907 = vadd.f32 %v905, %v906
  %v908 = vrot.slane %v907, 2
  %v909 = vadd.f32 %v907, %v908
  %v910 = vrot.slane %v909, 1
  %v911 = vadd.f32 %v909, %v910
  %912 = vmatprep.subr.mxu0 0.0
  %913 = vmatpush1.msra.mxu0 %v728
  %914 = vmatprep.subr.mxu0 0.0
  %915 = vmatpush1.msra.mxu0 %v729
  %916 = vmatprep.subr.mxu0 0.0
  %917 = vmatpush1.msra.mxu0 %v730
  %918 = vmatprep.subr.mxu0 0.0
  %919 = vmatpush1.msra.mxu0 %v731
  %920 = vmatprep.subr.mxu0 0.0
  %921 = vmatpush1.msra.mxu0 %v732
  %922 = vmatprep.subr.mxu0 0.0
  %923 = vmatpush1.msra.mxu0 %v733
  %924 = vmatprep.subr.mxu0 0.0
  %925 = vmatpush1.msra.mxu0 %v734
  %926 = vmatprep.subr.mxu0 0.0
  %927 = vmatpush1.msra.mxu0 %v735
  %928 = vmatprep.subr.mxu0 0.0
  %929 = vmatpush1.msra.mxu0 %v736
  %930 = vmatprep.subr.mxu0 0.0
  %931 = vmatpush1.msra.mxu0 %v737
  %932 = vmatprep.subr.mxu0 0.0
  %933 = vmatpush1.msra.mxu0 %v738
  %934 = vmatprep.subr.mxu0 0.0
  %935 = vmatpush1.msra.mxu0 %v739
  %936 = vmatprep.subr.mxu0 0.0
  %937 = vmatpush1.msra.mxu0 %v740
  %938 = vmatprep.subr.mxu0 0.0
  %939 = vmatpush1.msra.mxu0 %v741
  %940 = vmatprep.subr.mxu0 0.0
  %941 = vmatpush1.msra.mxu0 %v742
  %942 = vmatprep.subr.mxu0 0.0
  %943 = vmatpush1.msra.mxu0 %v743
  %944 = vmatprep.subr.mxu0 0.0
  %945 = vmatpush1.msra.mxu0 0.0
  %946 = vmatprep.subr.mxu0 0.0
  %947 = vmatpush1.msra.mxu0 0.0
  %948 = vmatprep.subr.mxu0 0.0
  %949 = vmatpush1.msra.mxu0 0.0
  %950 = vmatprep.subr.mxu0 0.0
  %951 = vmatpush1.msra.mxu0 0.0
  %952 = vmatprep.subr.mxu0 0.0
  %953 = vmatpush1.msra.mxu0 0.0
  %954 = vmatprep.subr.mxu0 0.0
  %955 = vmatpush1.msra.mxu0 0.0
  %956 = vmatprep.subr.mxu0 0.0
  %957 = vmatpush1.msra.mxu0 0.0
  %958 = vmatprep.subr.mxu0 0.0
  %959 = vmatpush1.msra.mxu0 0.0
  %960 = vmatprep.subr.mxu0 0.0
  %961 = vmatpush1.msra.mxu0 0.0
  %962 = vmatprep.subr.mxu0 0.0
  %963 = vmatpush1.msra.mxu0 0.0
  %964 = vmatprep.subr.mxu0 0.0
  %965 = vmatpush1.msra.mxu0 0.0
  %966 = vmatprep.subr.mxu0 0.0
  %967 = vmatpush1.msra.mxu0 0.0
  %968 = vmatprep.subr.mxu0 0.0
  %969 = vmatpush1.msra.mxu0 0.0
  %970 = vmatprep.subr.mxu0 0.0
  %971 = vmatpush1.msra.mxu0 0.0
  %972 = vmatprep.subr.mxu0 0.0
  %973 = vmatpush1.msra.mxu0 0.0
  %974 = vmatprep.subr.mxu0 0.0
  %975 = vmatpush1.msra.mxu0 0.0
  %976 = vmatprep.mubr.f32.mxu0 0.0
  %977 = vmatmul.mubr.f32.gmra.mrb[0].mxu0 %v911
  %v978 = vpop.f32.mrb[0].mxu0
  %v979 = vadd.f32 1e-05, %v978
  %v980 = vpop.f32.mrb[0].mxu0
  %981 = vdwg.mxu0
  %v982 = vrsqrt.pop %v979
  %v983 = vlaneseq
  %v984 = vshrl.u32 %v983, 7
  %v985 = vsub.s32 0, %v984
  %v986 = vrot.slane %v982, %v985
  %v987 = vmul.f32 %v903, %v986
  %v989 = vlaneseq
  %v990 = vshrl.u32 %v989, 7
  %v991 = vsub.s32 0, %v990
  %v992 = vrot.slane %v726, %v991
  %v994 = vmul.f32 %v987, %v992
  %v996 = vlaneseq
  %v997 = vshrl.u32 %v996, 7
  %v998 = vsub.s32 0, %v997
  %v999 = vrot.slane %v727, %v998
  %v1001 = vadd.f32 %v994, %v999
  %v1002 = vmax.f32 %v1001, 0.0
  %v1003 = vld [vmem:[%s21] sm:$0xff]
  %v1004 = vld [vmem:[%s21 + $0x8] sm:$0xff]
  %v1005 = vld [vmem:[%s21 + $0x10] sm:$0xff]
  %v1006 = vld [vmem:[%s21 + $0x18] sm:$0xff]
  %v1007 = vld [vmem:[%s21 + $0x20] sm:$0xff]
  %v1008 = vld [vmem:[%s21 + $0x28] sm:$0xff]
  %v1009 = vld [vmem:[%s21 + $0x30] sm:$0xff]
  %v1010 = vld [vmem:[%s21 + $0x38] sm:$0xff]
  %v1011 = vld [vmem:[%s21 + $0x40] sm:$0xff]
  %v1012 = vld [vmem:[%s21 + $0x48] sm:$0xff]
  %v1013 = vld [vmem:[%s21 + $0x50] sm:$0xff]
  %v1014 = vld [vmem:[%s21 + $0x58] sm:$0xff]
  %v1015 = vld [vmem:[%s21 + $0x60] sm:$0xff]
  %v1016 = vld [vmem:[%s21 + $0x68] sm:$0xff]
  %v1017 = vld [vmem:[%s21 + $0x70] sm:$0xff]
  %v1018 = vld [vmem:[%s21 + $0x78] sm:$0xff]
  %v1019 = vld [vmem:[%s22] sm:$0x1]
  %v1021 = vlaneseq
  %v1022 = vshrl.u32 %v1021, 7
  %v1023 = vsub.s32 0, %v1022
  %v1024 = vrot.slane %v1019, %v1023
  %1026 = vmatprep.subr.mxu0 0.0
  %1027 = vmatpush1.msra.mxu0 %v1003
  %1028 = vmatprep.subr.mxu0 0.0
  %1029 = vmatpush1.msra.mxu0 %v1004
  %1030 = vmatprep.subr.mxu0 0.0
  %1031 = vmatpush1.msra.mxu0 %v1005
  %1032 = vmatprep.subr.mxu0 0.0
  %1033 = vmatpush1.msra.mxu0 %v1006
  %1034 = vmatprep.subr.mxu0 0.0
  %1035 = vmatpush1.msra.mxu0 %v1007
  %1036 = vmatprep.subr.mxu0 0.0
  %1037 = vmatpush1.msra.mxu0 %v1008
  %1038 = vmatprep.subr.mxu0 0.0
  %1039 = vmatpush1.msra.mxu0 %v1009
  %1040 = vmatprep.subr.mxu0 0.0
  %1041 = vmatpush1.msra.mxu0 %v1010
  %1042 = vmatprep.subr.mxu0 0.0
  %1043 = vmatpush1.msra.mxu0 %v1011
  %1044 = vmatprep.subr.mxu0 0.0
  %1045 = vmatpush1.msra.mxu0 %v1012
  %1046 = vmatprep.subr.mxu0 0.0
  %1047 = vmatpush1.msra.mxu0 %v1013
  %1048 = vmatprep.subr.mxu0 0.0
  %1049 = vmatpush1.msra.mxu0 %v1014
  %1050 = vmatprep.subr.mxu0 0.0
  %1051 = vmatpush1.msra.mxu0 %v1015
  %1052 = vmatprep.subr.mxu0 0.0
  %1053 = vmatpush1.msra.mxu0 %v1016
  %1054 = vmatprep.subr.mxu0 0.0
  %1055 = vmatpush1.msra.mxu0 %v1017
  %1056 = vmatprep.subr.mxu0 0.0
  %1057 = vmatpush1.msra.mxu0 %v1018
  %1058 = vmatprep.subr.mxu0 0.0
  %1059 = vmatpush1.msra.mxu0 0.0
  %1060 = vmatprep.subr.mxu0 0.0
  %1061 = vmatpush1.msra.mxu0 0.0
  %1062 = vmatprep.subr.mxu0 0.0
  %1063 = vmatpush1.msra.mxu0 0.0
  %1064 = vmatprep.subr.mxu0 0.0
  %1065 = vmatpush1.msra.mxu0 0.0
  %1066 = vmatprep.subr.mxu0 0.0
  %1067 = vmatpush1.msra.mxu0 0.0
  %1068 = vmatprep.subr.mxu0 0.0
  %1069 = vmatpush1.msra.mxu0 0.0
  %1070 = vmatprep.subr.mxu0 0.0
  %1071 = vmatpush1.msra.mxu0 0.0
  %1072 = vmatprep.subr.mxu0 0.0
  %1073 = vmatpush1.msra.mxu0 0.0
  %1074 = vmatprep.subr.mxu0 0.0
  %1075 = vmatpush1.msra.mxu0 0.0
  %1076 = vmatprep.subr.mxu0 0.0
  %1077 = vmatpush1.msra.mxu0 0.0
  %1078 = vmatprep.subr.mxu0 0.0
  %1079 = vmatpush1.msra.mxu0 0.0
  %1080 = vmatprep.subr.mxu0 0.0
  %1081 = vmatpush1.msra.mxu0 0.0
  %1082 = vmatprep.subr.mxu0 0.0
  %1083 = vmatpush1.msra.mxu0 0.0
  %1084 = vmatprep.subr.mxu0 0.0
  %1085 = vmatpush1.msra.mxu0 0.0
  %1086 = vmatprep.subr.mxu0 0.0
  %1087 = vmatpush1.msra.mxu0 0.0
  %1088 = vmatprep.subr.mxu0 0.0
  %1089 = vmatpush1.msra.mxu0 0.0
  %1090 = vmatprep.mubr.f32.mxu0 0.0
  %1091 = vmatmul.mubr.f32.gmra.mrb[0].mxu0 %v1002
  %v1092 = vpop.f32.mrb[0].mxu0
  %v1093 = vadd.f32 %v1024, %v1092
  %v1094 = vpop.f32.mrb[0].mxu0
  %1095 = vdwg.mxu0
  %vm1096 = vcmask 517120
  %1097 = vst.msk [vmem:[%s23] sm:$0x3] %vm1096, %v1093
  // Predicated region
  $region94: #{decoder1d_forward.1} parent=0 // pred_check
    _
  $region95: #{decoder1d_forward.1} parent=0 // pred_check_branch
    %1099 = sbr.rel (0) target = $region97
  $region96: #{decoder1d_forward.1} parent=0 // pred_region
    _
  $region97: #{decoder1d_forward.1} parent=0 // pred_fallthru
    _
  // Predicated region
  $region98: #{decoder1d_forward.1} parent=0 // pred_check
    _
  $region99: #{decoder1d_forward.1} parent=0 // pred_check_branch
    %1101 = sbr.rel (0) target = $region101
  $region100: #{decoder1d_forward.1} parent=0 // pred_region
    _
  $region101: #{decoder1d_forward.1} parent=0 // pred_fallthru
    _

</llo_original>
